<compile_context>
chip_gen: v6e
topology: v6e:2x2x1
jax: 0.10.0
libtpu: 0.0.40
codegen_flags: <defaults>
</compile_context>

<pallas_src>
import functools

import jax
import jax.numpy as jnp
import numpy as np
from jax import lax
from jax.experimental import pallas as pl
from jax.experimental.pallas import tpu as pltpu

EPS = 1e-5
HIDDEN = 128
C_IN = 5
C_IN_PAD = 8           # zero-pad the K=5 input contraction dim to a full f32 sublane tile
UNROLL_MAX_BLOCKS = 12  # statically unroll the residual blocks up to this depth


def cnnet_kernel(x_ref, w_in_ref, b_in_ref,
                 w1_ref, g1_ref, be1_ref,
                 w2_ref, g2_ref, be2_ref,
                 w_out_ref, b_out_ref, o_ref, *, batch, n_pts):
    """Whole CNNet forward, resident in VMEM (single gridless invocation)."""
    bn_rows = batch * n_pts
    mm_dtype = w1_ref.dtype

    def conv(h2d, w):
        # (B*N, Cin) @ (Cin, Cout) on the MXU, f32 accumulation.  When h2d is already
        # in the matmul dtype (bf16 folded into the previous norm's store) the astype
        # is a no-op, so no extra full-tensor convert pass is emitted.
        return jnp.dot(h2d.astype(w.dtype), w, preferred_element_type=jnp.float32)

    def in_bn_relu(y2d, gamma, beta, out_dtype):
        # Fused InstanceNorm -> BatchNorm(training) -> ReLU -> cast, one affine pass.
        # y2d: (B*N, C) f32 ; gamma/beta: (1, C) f32
        y3 = y2d.reshape(batch, n_pts, HIDDEN)
        mu = jnp.mean(y3, axis=1, keepdims=True)                       # (B,1,C)
        ms = jnp.mean(y3 * y3, axis=1, keepdims=True)                  # (B,1,C)
        var = jnp.maximum(ms - mu * mu, 0.0)
        inv = lax.rsqrt(var + EPS)                                     # 1/sqrt(var+eps)
        # BatchNorm after InstanceNorm (exact identities):
        #   batch mean == 0,  batch var == mean_b(var / (var + eps))
        var_bn = jnp.mean(var * (inv * inv), axis=0, keepdims=True)    # (1,1,C)
        scale = inv * (lax.rsqrt(var_bn + EPS) * gamma)                # (B,1,C)
        shift = beta - mu * scale                                      # (B,1,C)
        z = jnp.maximum(y3 * scale + shift, 0.0)
        return z.astype(out_dtype).reshape(bn_rows, HIDDEN)

    x = x_ref[...].astype(jnp.float32)                                 # (B*N, 8)
    h = jnp.maximum(conv(x, w_in_ref[...]) + b_in_ref[...], 0.0)       # (B*N, 128) f32

    def res_block(i, h2d):
        res = h2d
        # NOTE: conv biases b1/b2 are omitted -- exactly cancelled by InstanceNorm.
        y = conv(h2d, w1_ref[i])
        y = in_bn_relu(y, g1_ref[i], be1_ref[i], mm_dtype)   # bf16 straight into conv2
        y = conv(y, w2_ref[i])
        y = in_bn_relu(y, g2_ref[i], be2_ref[i], jnp.float32)
        return y + res

    n_blocks = w1_ref.shape[0]
    if n_blocks <= UNROLL_MAX_BLOCKS:
        # static unroll: LLO scheduler sees across block boundaries, weight indexing
        # is static, norm epilogue of block i overlaps the matmul of block i+1.
        for i in range(n_blocks):
            h = res_block(i, h)
    else:
        h = lax.fori_loop(0, n_blocks, res_block, h)

    # Final 128 -> 1 projection: VPU multiply + lane reduce, lane-dense (B, N) store.
    h3 = h.reshape(batch, n_pts, HIDDEN)
    out = jnp.sum(h3 * w_out_ref[...], axis=-1) + b_out_ref[...]       # (B,N) + (1,1)
    o_ref[...] = out.astype(o_ref.dtype)


@functools.partial(jax.jit, static_argnames=("mm_dtype",))
def cnnet_forward(x_nchw, params, mm_dtype=jnp.bfloat16):
    """x_nchw: (B, 5, N, 1) like the PyTorch module. Returns (B, 1, N, 1)."""
    B, cin, N, W = x_nchw.shape
    assert cin == C_IN and W == 1
    assert N % 8 == 0, "N (number of correspondences) must be a multiple of 8"
    (w_in, b_in, w1, b1, g1, be1, w2, b2, g2, be2, w_out, b_out) = params
    del b1, b2  # exactly cancelled by the InstanceNorm that follows each conv

    # Channels-last, flattened rows for the matmuls; pad Cin 5 -> 8 with zeros
    # (exact). The tiny (B,5,N)->(B,N,5) transpose is the only wrapper-side movement.
    x2d = jnp.transpose(x_nchw[..., 0], (0, 2, 1)).reshape(B * N, C_IN)
    x2d = jnp.pad(x2d, ((0, 0), (0, C_IN_PAD - C_IN)))

    # Pre-transpose weights to (Cin, Cout) and cast the MXU operands once.
    w_in_t = jnp.pad(jnp.transpose(w_in), ((0, C_IN_PAD - C_IN), (0, 0))).astype(mm_dtype)
    w1_t = jnp.swapaxes(w1, 1, 2).astype(mm_dtype)                     # (nb,128,128)
    w2_t = jnp.swapaxes(w2, 1, 2).astype(mm_dtype)

    vspec = pl.BlockSpec(memory_space=pltpu.MemorySpace.VMEM)
    kernel = functools.partial(cnnet_kernel, batch=B, n_pts=N)

    out = pl.pallas_call(
        kernel,
        out_shape=jax.ShapeDtypeStruct((B, N), jnp.float32),
        in_specs=[vspec] * 11,
        out_specs=vspec,
        compiler_params=pltpu.CompilerParams(
            # raise v5e's 16 MiB default scoped limit; safe on v6e/v7x as well.
            vmem_limit_bytes=64 * 1024 * 1024),
    )(x2d, w_in_t, b_in, w1_t, g1, be1, w2_t, g2, be2, w_out, b_out)

    # back to NCHW (B, 1, N, 1) -- pure reshape, no transpose.
    return out[:, None, :, None]


def cnnet_reference(x_nchw, params, mm_dtype=jnp.float32):
    """Plain-JAX reference of the same forward (for verification)."""
    (w_in, b_in, w1, b1, g1, be1, w2, b2, g2, be2, w_out, b_out) = params
    x = jnp.transpose(x_nchw[..., 0], (0, 2, 1)).astype(jnp.float32)   # (B,N,5)

    def conv1x1(h, w, b):
        y = jnp.einsum('bnc,oc->bno', h.astype(mm_dtype), w.astype(mm_dtype),
                       preferred_element_type=jnp.float32)
        return y + b

    def inst_norm(y):
        mu = jnp.mean(y, axis=1, keepdims=True)
        var = jnp.mean((y - mu) ** 2, axis=1, keepdims=True)
        return (y - mu) / jnp.sqrt(var + EPS)

    def batch_norm(y, g, be):
        mu = jnp.mean(y, axis=(0, 1), keepdims=True)
        var = jnp.mean((y - mu) ** 2, axis=(0, 1), keepdims=True)
        return (y - mu) / jnp.sqrt(var + EPS) * g + be

    h = jax.nn.relu(conv1x1(x, w_in, b_in))
    for i in range(w1.shape[0]):
        res = h
        h = jax.nn.relu(batch_norm(inst_norm(conv1x1(h, w1[i], b1[i])), g1[i], be1[i]))
        h = jax.nn.relu(batch_norm(inst_norm(conv1x1(h, w2[i], b2[i])), g2[i], be2[i]))
        h = h + res
    out = conv1x1(h, w_out, b_out)
    return jnp.transpose(out, (0, 2, 1))[:, :, :, None]


def init_params(key, n_blocks):
    """Deterministic synthetic parameters (shapes match the PyTorch module)."""
    ks = jax.random.split(key, 12)
    w_in = 0.1 * jax.random.normal(ks[0], (HIDDEN, C_IN), jnp.float32)       # Conv2d(5,128,1)
    b_in = 0.05 * jax.random.normal(ks[1], (1, HIDDEN), jnp.float32)

    w1 = 0.1 * jax.random.normal(ks[2], (n_blocks, HIDDEN, HIDDEN), jnp.float32)
    b1 = 0.05 * jax.random.normal(ks[3], (n_blocks, 1, HIDDEN), jnp.float32)
    g1 = 1.0 + 0.1 * jax.random.normal(ks[4], (n_blocks, 1, HIDDEN), jnp.float32)  # BN weight
    be1 = 0.1 * jax.random.normal(ks[5], (n_blocks, 1, HIDDEN), jnp.float32)       # BN bias

    w2 = 0.1 * jax.random.normal(ks[6], (n_blocks, HIDDEN, HIDDEN), jnp.float32)
    b2 = 0.05 * jax.random.normal(ks[7], (n_blocks, 1, HIDDEN), jnp.float32)
    g2 = 1.0 + 0.1 * jax.random.normal(ks[8], (n_blocks, 1, HIDDEN), jnp.float32)
    be2 = 0.1 * jax.random.normal(ks[9], (n_blocks, 1, HIDDEN), jnp.float32)

    w_out = 0.1 * jax.random.normal(ks[10], (1, HIDDEN), jnp.float32)        # Conv2d(128,1,1)
    b_out = 0.05 * jax.random.normal(ks[11], (1, 1), jnp.float32)
    return (w_in, b_in, w1, b1, g1, be1, w2, b2, g2, be2, w_out, b_out)


if __name__ == "__main__":
    key = jax.random.PRNGKey(0)
    k_x, k_p = jax.random.split(key)

    B, N, n_blocks = 2, 64, 3                        # B image pairs, N correspondences
    x = jax.random.normal(k_x, (B, C_IN, N, 1), jnp.float32)   # NCHW like PyTorch
    params = init_params(k_p, n_blocks)

    # f32-matmul path: tight check of the kernel structure (incl. the exact fused
    # IN -> BN affine and the dropped pre-IN conv biases) against the straightforward
    # f32 reference.
    out_f32 = jax.block_until_ready(cnnet_forward(x, params, mm_dtype=jnp.float32))
    ref_f32 = jax.block_until_ready(cnnet_reference(x, params, mm_dtype=jnp.float32))
    assert out_f32.shape == (B, 1, N, 1), out_f32.shape
    np.testing.assert_allclose(np.asarray(out_f32), np.asarray(ref_f32),
                               rtol=5e-3, atol=5e-3)

    # bf16-matmul path (default / production): bf16 matmul rounding differences
    # between the Pallas MXU dot and XLA's einsum get amplified by the instance-norm
    # divisions (stats over only N=64 points here), so this check is intentionally
    # looser than the f32 structural check above.
    out_bf16 = jax.block_until_ready(cnnet_forward(x, params, mm_dtype=jnp.bfloat16))
    ref_bf16 = jax.block_until_ready(cnnet_reference(x, params, mm_dtype=jnp.bfloat16))
    assert out_bf16.shape == (B, 1, N, 1), out_bf16.shape
    np.testing.assert_allclose(np.asarray(out_bf16), np.asarray(ref_bf16),
                               rtol=5e-2, atol=5e-2)

    print("KERNEL_OK")
</pallas_src>

<mosaic_0001>
module attributes {stable_mosaic.version = 11 : i64} {
  func.func @cnnet_kernel(%arg0: memref<128x8xf32, #tpu.memory_space<vmem>>, %arg1: memref<8x128xf32, #tpu.memory_space<vmem>>, %arg2: memref<1x128xf32, #tpu.memory_space<vmem>>, %arg3: memref<3x128x128xf32, #tpu.memory_space<vmem>>, %arg4: memref<3x1x128xf32, #tpu.memory_space<vmem>>, %arg5: memref<3x1x128xf32, #tpu.memory_space<vmem>>, %arg6: memref<3x128x128xf32, #tpu.memory_space<vmem>>, %arg7: memref<3x1x128xf32, #tpu.memory_space<vmem>>, %arg8: memref<3x1x128xf32, #tpu.memory_space<vmem>>, %arg9: memref<1x128xf32, #tpu.memory_space<vmem>>, %arg10: memref<1x1xf32, #tpu.memory_space<vmem>>, %arg11: memref<2x64xf32, #tpu.memory_space<vmem>>) attributes {dimension_semantics = [], scalar_prefetch = 0 : i64, scratch_operands = 0 : i64, tpu.core_type = #tpu.core_type<tc>} {
    %c0 = arith.constant 0 : index
    %c0_0 = arith.constant 0 : index
    %0 = vector.load %arg0[%c0, %c0_0] : memref<128x8xf32, #tpu.memory_space<vmem>>, vector<128x8xf32>
    %c0_1 = arith.constant 0 : index
    %c0_2 = arith.constant 0 : index
    %1 = vector.load %arg1[%c0_1, %c0_2] : memref<8x128xf32, #tpu.memory_space<vmem>>, vector<8x128xf32>
    %cst = arith.constant dense<0.000000e+00> : vector<128x128xf32>
    %2 = tpu.matmul %0, %1, %cst {dimension_numbers = #tpu.dot_dimension_numbers<[1], [0], [0], [1], [0, 0, 1, 1], [], []>} : vector<128x8xf32>, vector<8x128xf32>, vector<128x128xf32> -> vector<128x128xf32>
    %c0_3 = arith.constant 0 : index
    %c0_4 = arith.constant 0 : index
    %3 = vector.load %arg2[%c0_3, %c0_4] : memref<1x128xf32, #tpu.memory_space<vmem>>, vector<1x128xf32>
    %4 = vector.broadcast %3 : vector<1x128xf32> to vector<128x128xf32>
    %5 = arith.addf %2, %4 : vector<128x128xf32>
    %cst_5 = arith.constant 0.000000e+00 : f32
    %6 = vector.broadcast %cst_5 : f32 to vector<128x128xf32>
    %7 = arith.maximumf %5, %6 : vector<128x128xf32>
    %c0_6 = arith.constant 0 : index
    %c0_7 = arith.constant 0 : index
    %c0_8 = arith.constant 0 : index
    %8 = vector.load %arg3[%c0_6, %c0_7, %c0_8] : memref<3x128x128xf32, #tpu.memory_space<vmem>>, vector<1x128x128xf32>
    %9 = vector.shape_cast %8 : vector<1x128x128xf32> to vector<128x128xf32>
    %cst_9 = arith.constant dense<0.000000e+00> : vector<128x128xf32>
    %10 = tpu.matmul %7, %9, %cst_9 {dimension_numbers = #tpu.dot_dimension_numbers<[1], [0], [0], [1], [0, 0, 1, 1], [], []>} : vector<128x128xf32>, vector<128x128xf32>, vector<128x128xf32> -> vector<128x128xf32>
    %c0_10 = arith.constant 0 : index
    %c0_11 = arith.constant 0 : index
    %c0_12 = arith.constant 0 : index
    %11 = vector.load %arg4[%c0_10, %c0_11, %c0_12] : memref<3x1x128xf32, #tpu.memory_space<vmem>>, vector<1x1x128xf32>
    %12 = vector.shape_cast %11 : vector<1x1x128xf32> to vector<1x128xf32>
    %c0_13 = arith.constant 0 : index
    %c0_14 = arith.constant 0 : index
    %c0_15 = arith.constant 0 : index
    %13 = vector.load %arg5[%c0_13, %c0_14, %c0_15] : memref<3x1x128xf32, #tpu.memory_space<vmem>>, vector<1x1x128xf32>
    %14 = vector.shape_cast %13 : vector<1x1x128xf32> to vector<1x128xf32>
    %15 = vector.shape_cast %10 : vector<128x128xf32> to vector<2x64x128xf32>
    %cst_16 = arith.constant dense<0.000000e+00> : vector<2x128xf32>
    %16 = vector.multi_reduction <add>, %15, %cst_16 [1] : vector<2x64x128xf32> to vector<2x128xf32>
    %17 = vector.shape_cast %16 : vector<2x128xf32> to vector<2x1x128xf32>
    %cst_17 = arith.constant 6.400000e+01 : f32
    %18 = vector.broadcast %cst_17 : f32 to vector<2x1x128xf32>
    %19 = arith.divf %17, %18 : vector<2x1x128xf32>
    %20 = arith.mulf %15, %15 : vector<2x64x128xf32>
    %cst_18 = arith.constant dense<0.000000e+00> : vector<2x128xf32>
    %21 = vector.multi_reduction <add>, %20, %cst_18 [1] : vector<2x64x128xf32> to vector<2x128xf32>
    %22 = vector.shape_cast %21 : vector<2x128xf32> to vector<2x1x128xf32>
    %cst_19 = arith.constant 6.400000e+01 : f32
    %23 = vector.broadcast %cst_19 : f32 to vector<2x1x128xf32>
    %24 = arith.divf %22, %23 : vector<2x1x128xf32>
    %25 = arith.mulf %19, %19 : vector<2x1x128xf32>
    %26 = arith.subf %24, %25 : vector<2x1x128xf32>
    %cst_20 = arith.constant 0.000000e+00 : f32
    %27 = vector.broadcast %cst_20 : f32 to vector<2x1x128xf32>
    %28 = arith.maximumf %26, %27 : vector<2x1x128xf32>
    %cst_21 = arith.constant 9.99999974E-6 : f32
    %29 = vector.broadcast %cst_21 : f32 to vector<2x1x128xf32>
    %30 = arith.addf %28, %29 : vector<2x1x128xf32>
    %31 = math.rsqrt %30 : vector<2x1x128xf32>
    %32 = arith.mulf %31, %31 : vector<2x1x128xf32>
    %33 = arith.mulf %28, %32 : vector<2x1x128xf32>
    %cst_22 = arith.constant dense<0.000000e+00> : vector<1x128xf32>
    %34 = vector.multi_reduction <add>, %33, %cst_22 [0] : vector<2x1x128xf32> to vector<1x128xf32>
    %35 = vector.shape_cast %34 : vector<1x128xf32> to vector<1x1x128xf32>
    %cst_23 = arith.constant 2.000000e+00 : f32
    %36 = vector.broadcast %cst_23 : f32 to vector<1x1x128xf32>
    %37 = arith.divf %35, %36 : vector<1x1x128xf32>
    %cst_24 = arith.constant 9.99999974E-6 : f32
    %38 = vector.broadcast %cst_24 : f32 to vector<1x1x128xf32>
    %39 = arith.addf %37, %38 : vector<1x1x128xf32>
    %40 = math.rsqrt %39 : vector<1x1x128xf32>
    %41 = vector.shape_cast %12 : vector<1x128xf32> to vector<1x1x128xf32>
    %42 = arith.mulf %40, %41 : vector<1x1x128xf32>
    %43 = vector.broadcast %42 : vector<1x1x128xf32> to vector<2x1x128xf32>
    %44 = arith.mulf %31, %43 : vector<2x1x128xf32>
    %45 = arith.mulf %19, %44 : vector<2x1x128xf32>
    %46 = vector.shape_cast %14 : vector<1x128xf32> to vector<1x1x128xf32>
    %47 = vector.broadcast %46 : vector<1x1x128xf32> to vector<2x1x128xf32>
    %48 = arith.subf %47, %45 : vector<2x1x128xf32>
    %49 = vector.broadcast %44 : vector<2x1x128xf32> to vector<2x64x128xf32>
    %50 = arith.mulf %15, %49 : vector<2x64x128xf32>
    %51 = vector.broadcast %48 : vector<2x1x128xf32> to vector<2x64x128xf32>
    %52 = arith.addf %50, %51 : vector<2x64x128xf32>
    %cst_25 = arith.constant 0.000000e+00 : f32
    %53 = vector.broadcast %cst_25 : f32 to vector<2x64x128xf32>
    %54 = arith.maximumf %52, %53 : vector<2x64x128xf32>
    %55 = vector.shape_cast %54 : vector<2x64x128xf32> to vector<128x128xf32>
    %c0_26 = arith.constant 0 : index
    %c0_27 = arith.constant 0 : index
    %c0_28 = arith.constant 0 : index
    %56 = vector.load %arg6[%c0_26, %c0_27, %c0_28] : memref<3x128x128xf32, #tpu.memory_space<vmem>>, vector<1x128x128xf32>
    %57 = vector.shape_cast %56 : vector<1x128x128xf32> to vector<128x128xf32>
    %cst_29 = arith.constant dense<0.000000e+00> : vector<128x128xf32>
    %58 = tpu.matmul %55, %57, %cst_29 {dimension_numbers = #tpu.dot_dimension_numbers<[1], [0], [0], [1], [0, 0, 1, 1], [], []>} : vector<128x128xf32>, vector<128x128xf32>, vector<128x128xf32> -> vector<128x128xf32>
    %c0_30 = arith.constant 0 : index
    %c0_31 = arith.constant 0 : index
    %c0_32 = arith.constant 0 : index
    %59 = vector.load %arg7[%c0_30, %c0_31, %c0_32] : memref<3x1x128xf32, #tpu.memory_space<vmem>>, vector<1x1x128xf32>
    %60 = vector.shape_cast %59 : vector<1x1x128xf32> to vector<1x128xf32>
    %c0_33 = arith.constant 0 : index
    %c0_34 = arith.constant 0 : index
    %c0_35 = arith.constant 0 : index
    %61 = vector.load %arg8[%c0_33, %c0_34, %c0_35] : memref<3x1x128xf32, #tpu.memory_space<vmem>>, vector<1x1x128xf32>
    %62 = vector.shape_cast %61 : vector<1x1x128xf32> to vector<1x128xf32>
    %63 = vector.shape_cast %58 : vector<128x128xf32> to vector<2x64x128xf32>
    %cst_36 = arith.constant dense<0.000000e+00> : vector<2x128xf32>
    %64 = vector.multi_reduction <add>, %63, %cst_36 [1] : vector<2x64x128xf32> to vector<2x128xf32>
    %65 = vector.shape_cast %64 : vector<2x128xf32> to vector<2x1x128xf32>
    %cst_37 = arith.constant 6.400000e+01 : f32
    %66 = vector.broadcast %cst_37 : f32 to vector<2x1x128xf32>
    %67 = arith.divf %65, %66 : vector<2x1x128xf32>
    %68 = arith.mulf %63, %63 : vector<2x64x128xf32>
    %cst_38 = arith.constant dense<0.000000e+00> : vector<2x128xf32>
    %69 = vector.multi_reduction <add>, %68, %cst_38 [1] : vector<2x64x128xf32> to vector<2x128xf32>
    %70 = vector.shape_cast %69 : vector<2x128xf32> to vector<2x1x128xf32>
    %cst_39 = arith.constant 6.400000e+01 : f32
    %71 = vector.broadcast %cst_39 : f32 to vector<2x1x128xf32>
    %72 = arith.divf %70, %71 : vector<2x1x128xf32>
    %73 = arith.mulf %67, %67 : vector<2x1x128xf32>
    %74 = arith.subf %72, %73 : vector<2x1x128xf32>
    %cst_40 = arith.constant 0.000000e+00 : f32
    %75 = vector.broadcast %cst_40 : f32 to vector<2x1x128xf32>
    %76 = arith.maximumf %74, %75 : vector<2x1x128xf32>
    %cst_41 = arith.constant 9.99999974E-6 : f32
    %77 = vector.broadcast %cst_41 : f32 to vector<2x1x128xf32>
    %78 = arith.addf %76, %77 : vector<2x1x128xf32>
    %79 = math.rsqrt %78 : vector<2x1x128xf32>
    %80 = arith.mulf %79, %79 : vector<2x1x128xf32>
    %81 = arith.mulf %76, %80 : vector<2x1x128xf32>
    %cst_42 = arith.constant dense<0.000000e+00> : vector<1x128xf32>
    %82 = vector.multi_reduction <add>, %81, %cst_42 [0] : vector<2x1x128xf32> to vector<1x128xf32>
    %83 = vector.shape_cast %82 : vector<1x128xf32> to vector<1x1x128xf32>
    %cst_43 = arith.constant 2.000000e+00 : f32
    %84 = vector.broadcast %cst_43 : f32 to vector<1x1x128xf32>
    %85 = arith.divf %83, %84 : vector<1x1x128xf32>
    %cst_44 = arith.constant 9.99999974E-6 : f32
    %86 = vector.broadcast %cst_44 : f32 to vector<1x1x128xf32>
    %87 = arith.addf %85, %86 : vector<1x1x128xf32>
    %88 = math.rsqrt %87 : vector<1x1x128xf32>
    %89 = vector.shape_cast %60 : vector<1x128xf32> to vector<1x1x128xf32>
    %90 = arith.mulf %88, %89 : vector<1x1x128xf32>
    %91 = vector.broadcast %90 : vector<1x1x128xf32> to vector<2x1x128xf32>
    %92 = arith.mulf %79, %91 : vector<2x1x128xf32>
    %93 = arith.mulf %67, %92 : vector<2x1x128xf32>
    %94 = vector.shape_cast %62 : vector<1x128xf32> to vector<1x1x128xf32>
    %95 = vector.broadcast %94 : vector<1x1x128xf32> to vector<2x1x128xf32>
    %96 = arith.subf %95, %93 : vector<2x1x128xf32>
    %97 = vector.broadcast %92 : vector<2x1x128xf32> to vector<2x64x128xf32>
    %98 = arith.mulf %63, %97 : vector<2x64x128xf32>
    %99 = vector.broadcast %96 : vector<2x1x128xf32> to vector<2x64x128xf32>
    %100 = arith.addf %98, %99 : vector<2x64x128xf32>
    %cst_45 = arith.constant 0.000000e+00 : f32
    %101 = vector.broadcast %cst_45 : f32 to vector<2x64x128xf32>
    %102 = arith.maximumf %100, %101 : vector<2x64x128xf32>
    %103 = vector.shape_cast %102 : vector<2x64x128xf32> to vector<128x128xf32>
    %104 = arith.addf %103, %7 : vector<128x128xf32>
    %c1 = arith.constant 1 : index
    %c0_46 = arith.constant 0 : index
    %c0_47 = arith.constant 0 : index
    %105 = vector.load %arg3[%c1, %c0_46, %c0_47] : memref<3x128x128xf32, #tpu.memory_space<vmem>>, vector<1x128x128xf32>
    %106 = vector.shape_cast %105 : vector<1x128x128xf32> to vector<128x128xf32>
    %cst_48 = arith.constant dense<0.000000e+00> : vector<128x128xf32>
    %107 = tpu.matmul %104, %106, %cst_48 {dimension_numbers = #tpu.dot_dimension_numbers<[1], [0], [0], [1], [0, 0, 1, 1], [], []>} : vector<128x128xf32>, vector<128x128xf32>, vector<128x128xf32> -> vector<128x128xf32>
    %c1_49 = arith.constant 1 : index
    %c0_50 = arith.constant 0 : index
    %c0_51 = arith.constant 0 : index
    %108 = vector.load %arg4[%c1_49, %c0_50, %c0_51] : memref<3x1x128xf32, #tpu.memory_space<vmem>>, vector<1x1x128xf32>
    %109 = vector.shape_cast %108 : vector<1x1x128xf32> to vector<1x128xf32>
    %c1_52 = arith.constant 1 : index
    %c0_53 = arith.constant 0 : index
    %c0_54 = arith.constant 0 : index
    %110 = vector.load %arg5[%c1_52, %c0_53, %c0_54] : memref<3x1x128xf32, #tpu.memory_space<vmem>>, vector<1x1x128xf32>
    %111 = vector.shape_cast %110 : vector<1x1x128xf32> to vector<1x128xf32>
    %112 = vector.shape_cast %107 : vector<128x128xf32> to vector<2x64x128xf32>
    %cst_55 = arith.constant dense<0.000000e+00> : vector<2x128xf32>
    %113 = vector.multi_reduction <add>, %112, %cst_55 [1] : vector<2x64x128xf32> to vector<2x128xf32>
    %114 = vector.shape_cast %113 : vector<2x128xf32> to vector<2x1x128xf32>
    %cst_56 = arith.constant 6.400000e+01 : f32
    %115 = vector.broadcast %cst_56 : f32 to vector<2x1x128xf32>
    %116 = arith.divf %114, %115 : vector<2x1x128xf32>
    %117 = arith.mulf %112, %112 : vector<2x64x128xf32>
    %cst_57 = arith.constant dense<0.000000e+00> : vector<2x128xf32>
    %118 = vector.multi_reduction <add>, %117, %cst_57 [1] : vector<2x64x128xf32> to vector<2x128xf32>
    %119 = vector.shape_cast %118 : vector<2x128xf32> to vector<2x1x128xf32>
    %cst_58 = arith.constant 6.400000e+01 : f32
    %120 = vector.broadcast %cst_58 : f32 to vector<2x1x128xf32>
    %121 = arith.divf %119, %120 : vector<2x1x128xf32>
    %122 = arith.mulf %116, %116 : vector<2x1x128xf32>
    %123 = arith.subf %121, %122 : vector<2x1x128xf32>
    %cst_59 = arith.constant 0.000000e+00 : f32
    %124 = vector.broadcast %cst_59 : f32 to vector<2x1x128xf32>
    %125 = arith.maximumf %123, %124 : vector<2x1x128xf32>
    %cst_60 = arith.constant 9.99999974E-6 : f32
    %126 = vector.broadcast %cst_60 : f32 to vector<2x1x128xf32>
    %127 = arith.addf %125, %126 : vector<2x1x128xf32>
    %128 = math.rsqrt %127 : vector<2x1x128xf32>
    %129 = arith.mulf %128, %128 : vector<2x1x128xf32>
    %130 = arith.mulf %125, %129 : vector<2x1x128xf32>
    %cst_61 = arith.constant dense<0.000000e+00> : vector<1x128xf32>
    %131 = vector.multi_reduction <add>, %130, %cst_61 [0] : vector<2x1x128xf32> to vector<1x128xf32>
    %132 = vector.shape_cast %131 : vector<1x128xf32> to vector<1x1x128xf32>
    %cst_62 = arith.constant 2.000000e+00 : f32
    %133 = vector.broadcast %cst_62 : f32 to vector<1x1x128xf32>
    %134 = arith.divf %132, %133 : vector<1x1x128xf32>
    %cst_63 = arith.constant 9.99999974E-6 : f32
    %135 = vector.broadcast %cst_63 : f32 to vector<1x1x128xf32>
    %136 = arith.addf %134, %135 : vector<1x1x128xf32>
    %137 = math.rsqrt %136 : vector<1x1x128xf32>
    %138 = vector.shape_cast %109 : vector<1x128xf32> to vector<1x1x128xf32>
    %139 = arith.mulf %137, %138 : vector<1x1x128xf32>
    %140 = vector.broadcast %139 : vector<1x1x128xf32> to vector<2x1x128xf32>
    %141 = arith.mulf %128, %140 : vector<2x1x128xf32>
    %142 = arith.mulf %116, %141 : vector<2x1x128xf32>
    %143 = vector.shape_cast %111 : vector<1x128xf32> to vector<1x1x128xf32>
    %144 = vector.broadcast %143 : vector<1x1x128xf32> to vector<2x1x128xf32>
    %145 = arith.subf %144, %142 : vector<2x1x128xf32>
    %146 = vector.broadcast %141 : vector<2x1x128xf32> to vector<2x64x128xf32>
    %147 = arith.mulf %112, %146 : vector<2x64x128xf32>
    %148 = vector.broadcast %145 : vector<2x1x128xf32> to vector<2x64x128xf32>
    %149 = arith.addf %147, %148 : vector<2x64x128xf32>
    %cst_64 = arith.constant 0.000000e+00 : f32
    %150 = vector.broadcast %cst_64 : f32 to vector<2x64x128xf32>
    %151 = arith.maximumf %149, %150 : vector<2x64x128xf32>
    %152 = vector.shape_cast %151 : vector<2x64x128xf32> to vector<128x128xf32>
    %c1_65 = arith.constant 1 : index
    %c0_66 = arith.constant 0 : index
    %c0_67 = arith.constant 0 : index
    %153 = vector.load %arg6[%c1_65, %c0_66, %c0_67] : memref<3x128x128xf32, #tpu.memory_space<vmem>>, vector<1x128x128xf32>
    %154 = vector.shape_cast %153 : vector<1x128x128xf32> to vector<128x128xf32>
    %cst_68 = arith.constant dense<0.000000e+00> : vector<128x128xf32>
    %155 = tpu.matmul %152, %154, %cst_68 {dimension_numbers = #tpu.dot_dimension_numbers<[1], [0], [0], [1], [0, 0, 1, 1], [], []>} : vector<128x128xf32>, vector<128x128xf32>, vector<128x128xf32> -> vector<128x128xf32>
    %c1_69 = arith.constant 1 : index
    %c0_70 = arith.constant 0 : index
    %c0_71 = arith.constant 0 : index
    %156 = vector.load %arg7[%c1_69, %c0_70, %c0_71] : memref<3x1x128xf32, #tpu.memory_space<vmem>>, vector<1x1x128xf32>
    %157 = vector.shape_cast %156 : vector<1x1x128xf32> to vector<1x128xf32>
    %c1_72 = arith.constant 1 : index
    %c0_73 = arith.constant 0 : index
    %c0_74 = arith.constant 0 : index
    %158 = vector.load %arg8[%c1_72, %c0_73, %c0_74] : memref<3x1x128xf32, #tpu.memory_space<vmem>>, vector<1x1x128xf32>
    %159 = vector.shape_cast %158 : vector<1x1x128xf32> to vector<1x128xf32>
    %160 = vector.shape_cast %155 : vector<128x128xf32> to vector<2x64x128xf32>
    %cst_75 = arith.constant dense<0.000000e+00> : vector<2x128xf32>
    %161 = vector.multi_reduction <add>, %160, %cst_75 [1] : vector<2x64x128xf32> to vector<2x128xf32>
    %162 = vector.shape_cast %161 : vector<2x128xf32> to vector<2x1x128xf32>
    %cst_76 = arith.constant 6.400000e+01 : f32
    %163 = vector.broadcast %cst_76 : f32 to vector<2x1x128xf32>
    %164 = arith.divf %162, %163 : vector<2x1x128xf32>
    %165 = arith.mulf %160, %160 : vector<2x64x128xf32>
    %cst_77 = arith.constant dense<0.000000e+00> : vector<2x128xf32>
    %166 = vector.multi_reduction <add>, %165, %cst_77 [1] : vector<2x64x128xf32> to vector<2x128xf32>
    %167 = vector.shape_cast %166 : vector<2x128xf32> to vector<2x1x128xf32>
    %cst_78 = arith.constant 6.400000e+01 : f32
    %168 = vector.broadcast %cst_78 : f32 to vector<2x1x128xf32>
    %169 = arith.divf %167, %168 : vector<2x1x128xf32>
    %170 = arith.mulf %164, %164 : vector<2x1x128xf32>
    %171 = arith.subf %169, %170 : vector<2x1x128xf32>
    %cst_79 = arith.constant 0.000000e+00 : f32
    %172 = vector.broadcast %cst_79 : f32 to vector<2x1x128xf32>
    %173 = arith.maximumf %171, %172 : vector<2x1x128xf32>
    %cst_80 = arith.constant 9.99999974E-6 : f32
    %174 = vector.broadcast %cst_80 : f32 to vector<2x1x128xf32>
    %175 = arith.addf %173, %174 : vector<2x1x128xf32>
    %176 = math.rsqrt %175 : vector<2x1x128xf32>
    %177 = arith.mulf %176, %176 : vector<2x1x128xf32>
    %178 = arith.mulf %173, %177 : vector<2x1x128xf32>
    %cst_81 = arith.constant dense<0.000000e+00> : vector<1x128xf32>
    %179 = vector.multi_reduction <add>, %178, %cst_81 [0] : vector<2x1x128xf32> to vector<1x128xf32>
    %180 = vector.shape_cast %179 : vector<1x128xf32> to vector<1x1x128xf32>
    %cst_82 = arith.constant 2.000000e+00 : f32
    %181 = vector.broadcast %cst_82 : f32 to vector<1x1x128xf32>
    %182 = arith.divf %180, %181 : vector<1x1x128xf32>
    %cst_83 = arith.constant 9.99999974E-6 : f32
    %183 = vector.broadcast %cst_83 : f32 to vector<1x1x128xf32>
    %184 = arith.addf %182, %183 : vector<1x1x128xf32>
    %185 = math.rsqrt %184 : vector<1x1x128xf32>
    %186 = vector.shape_cast %157 : vector<1x128xf32> to vector<1x1x128xf32>
    %187 = arith.mulf %185, %186 : vector<1x1x128xf32>
    %188 = vector.broadcast %187 : vector<1x1x128xf32> to vector<2x1x128xf32>
    %189 = arith.mulf %176, %188 : vector<2x1x128xf32>
    %190 = arith.mulf %164, %189 : vector<2x1x128xf32>
    %191 = vector.shape_cast %159 : vector<1x128xf32> to vector<1x1x128xf32>
    %192 = vector.broadcast %191 : vector<1x1x128xf32> to vector<2x1x128xf32>
    %193 = arith.subf %192, %190 : vector<2x1x128xf32>
    %194 = vector.broadcast %189 : vector<2x1x128xf32> to vector<2x64x128xf32>
    %195 = arith.mulf %160, %194 : vector<2x64x128xf32>
    %196 = vector.broadcast %193 : vector<2x1x128xf32> to vector<2x64x128xf32>
    %197 = arith.addf %195, %196 : vector<2x64x128xf32>
    %cst_84 = arith.constant 0.000000e+00 : f32
    %198 = vector.broadcast %cst_84 : f32 to vector<2x64x128xf32>
    %199 = arith.maximumf %197, %198 : vector<2x64x128xf32>
    %200 = vector.shape_cast %199 : vector<2x64x128xf32> to vector<128x128xf32>
    %201 = arith.addf %200, %104 : vector<128x128xf32>
    %c2 = arith.constant 2 : index
    %c0_85 = arith.constant 0 : index
    %c0_86 = arith.constant 0 : index
    %202 = vector.load %arg3[%c2, %c0_85, %c0_86] : memref<3x128x128xf32, #tpu.memory_space<vmem>>, vector<1x128x128xf32>
    %203 = vector.shape_cast %202 : vector<1x128x128xf32> to vector<128x128xf32>
    %cst_87 = arith.constant dense<0.000000e+00> : vector<128x128xf32>
    %204 = tpu.matmul %201, %203, %cst_87 {dimension_numbers = #tpu.dot_dimension_numbers<[1], [0], [0], [1], [0, 0, 1, 1], [], []>} : vector<128x128xf32>, vector<128x128xf32>, vector<128x128xf32> -> vector<128x128xf32>
    %c2_88 = arith.constant 2 : index
    %c0_89 = arith.constant 0 : index
    %c0_90 = arith.constant 0 : index
    %205 = vector.load %arg4[%c2_88, %c0_89, %c0_90] : memref<3x1x128xf32, #tpu.memory_space<vmem>>, vector<1x1x128xf32>
    %206 = vector.shape_cast %205 : vector<1x1x128xf32> to vector<1x128xf32>
    %c2_91 = arith.constant 2 : index
    %c0_92 = arith.constant 0 : index
    %c0_93 = arith.constant 0 : index
    %207 = vector.load %arg5[%c2_91, %c0_92, %c0_93] : memref<3x1x128xf32, #tpu.memory_space<vmem>>, vector<1x1x128xf32>
    %208 = vector.shape_cast %207 : vector<1x1x128xf32> to vector<1x128xf32>
    %209 = vector.shape_cast %204 : vector<128x128xf32> to vector<2x64x128xf32>
    %cst_94 = arith.constant dense<0.000000e+00> : vector<2x128xf32>
    %210 = vector.multi_reduction <add>, %209, %cst_94 [1] : vector<2x64x128xf32> to vector<2x128xf32>
    %211 = vector.shape_cast %210 : vector<2x128xf32> to vector<2x1x128xf32>
    %cst_95 = arith.constant 6.400000e+01 : f32
    %212 = vector.broadcast %cst_95 : f32 to vector<2x1x128xf32>
    %213 = arith.divf %211, %212 : vector<2x1x128xf32>
    %214 = arith.mulf %209, %209 : vector<2x64x128xf32>
    %cst_96 = arith.constant dense<0.000000e+00> : vector<2x128xf32>
    %215 = vector.multi_reduction <add>, %214, %cst_96 [1] : vector<2x64x128xf32> to vector<2x128xf32>
    %216 = vector.shape_cast %215 : vector<2x128xf32> to vector<2x1x128xf32>
    %cst_97 = arith.constant 6.400000e+01 : f32
    %217 = vector.broadcast %cst_97 : f32 to vector<2x1x128xf32>
    %218 = arith.divf %216, %217 : vector<2x1x128xf32>
    %219 = arith.mulf %213, %213 : vector<2x1x128xf32>
    %220 = arith.subf %218, %219 : vector<2x1x128xf32>
    %cst_98 = arith.constant 0.000000e+00 : f32
    %221 = vector.broadcast %cst_98 : f32 to vector<2x1x128xf32>
    %222 = arith.maximumf %220, %221 : vector<2x1x128xf32>
    %cst_99 = arith.constant 9.99999974E-6 : f32
    %223 = vector.broadcast %cst_99 : f32 to vector<2x1x128xf32>
    %224 = arith.addf %222, %223 : vector<2x1x128xf32>
    %225 = math.rsqrt %224 : vector<2x1x128xf32>
    %226 = arith.mulf %225, %225 : vector<2x1x128xf32>
    %227 = arith.mulf %222, %226 : vector<2x1x128xf32>
    %cst_100 = arith.constant dense<0.000000e+00> : vector<1x128xf32>
    %228 = vector.multi_reduction <add>, %227, %cst_100 [0] : vector<2x1x128xf32> to vector<1x128xf32>
    %229 = vector.shape_cast %228 : vector<1x128xf32> to vector<1x1x128xf32>
    %cst_101 = arith.constant 2.000000e+00 : f32
    %230 = vector.broadcast %cst_101 : f32 to vector<1x1x128xf32>
    %231 = arith.divf %229, %230 : vector<1x1x128xf32>
    %cst_102 = arith.constant 9.99999974E-6 : f32
    %232 = vector.broadcast %cst_102 : f32 to vector<1x1x128xf32>
    %233 = arith.addf %231, %232 : vector<1x1x128xf32>
    %234 = math.rsqrt %233 : vector<1x1x128xf32>
    %235 = vector.shape_cast %206 : vector<1x128xf32> to vector<1x1x128xf32>
    %236 = arith.mulf %234, %235 : vector<1x1x128xf32>
    %237 = vector.broadcast %236 : vector<1x1x128xf32> to vector<2x1x128xf32>
    %238 = arith.mulf %225, %237 : vector<2x1x128xf32>
    %239 = arith.mulf %213, %238 : vector<2x1x128xf32>
    %240 = vector.shape_cast %208 : vector<1x128xf32> to vector<1x1x128xf32>
    %241 = vector.broadcast %240 : vector<1x1x128xf32> to vector<2x1x128xf32>
    %242 = arith.subf %241, %239 : vector<2x1x128xf32>
    %243 = vector.broadcast %238 : vector<2x1x128xf32> to vector<2x64x128xf32>
    %244 = arith.mulf %209, %243 : vector<2x64x128xf32>
    %245 = vector.broadcast %242 : vector<2x1x128xf32> to vector<2x64x128xf32>
    %246 = arith.addf %244, %245 : vector<2x64x128xf32>
    %cst_103 = arith.constant 0.000000e+00 : f32
    %247 = vector.broadcast %cst_103 : f32 to vector<2x64x128xf32>
    %248 = arith.maximumf %246, %247 : vector<2x64x128xf32>
    %249 = vector.shape_cast %248 : vector<2x64x128xf32> to vector<128x128xf32>
    %c2_104 = arith.constant 2 : index
    %c0_105 = arith.constant 0 : index
    %c0_106 = arith.constant 0 : index
    %250 = vector.load %arg6[%c2_104, %c0_105, %c0_106] : memref<3x128x128xf32, #tpu.memory_space<vmem>>, vector<1x128x128xf32>
    %251 = vector.shape_cast %250 : vector<1x128x128xf32> to vector<128x128xf32>
    %cst_107 = arith.constant dense<0.000000e+00> : vector<128x128xf32>
    %252 = tpu.matmul %249, %251, %cst_107 {dimension_numbers = #tpu.dot_dimension_numbers<[1], [0], [0], [1], [0, 0, 1, 1], [], []>} : vector<128x128xf32>, vector<128x128xf32>, vector<128x128xf32> -> vector<128x128xf32>
    %c2_108 = arith.constant 2 : index
    %c0_109 = arith.constant 0 : index
    %c0_110 = arith.constant 0 : index
    %253 = vector.load %arg7[%c2_108, %c0_109, %c0_110] : memref<3x1x128xf32, #tpu.memory_space<vmem>>, vector<1x1x128xf32>
    %254 = vector.shape_cast %253 : vector<1x1x128xf32> to vector<1x128xf32>
    %c2_111 = arith.constant 2 : index
    %c0_112 = arith.constant 0 : index
    %c0_113 = arith.constant 0 : index
    %255 = vector.load %arg8[%c2_111, %c0_112, %c0_113] : memref<3x1x128xf32, #tpu.memory_space<vmem>>, vector<1x1x128xf32>
    %256 = vector.shape_cast %255 : vector<1x1x128xf32> to vector<1x128xf32>
    %257 = vector.shape_cast %252 : vector<128x128xf32> to vector<2x64x128xf32>
    %cst_114 = arith.constant dense<0.000000e+00> : vector<2x128xf32>
    %258 = vector.multi_reduction <add>, %257, %cst_114 [1] : vector<2x64x128xf32> to vector<2x128xf32>
    %259 = vector.shape_cast %258 : vector<2x128xf32> to vector<2x1x128xf32>
    %cst_115 = arith.constant 6.400000e+01 : f32
    %260 = vector.broadcast %cst_115 : f32 to vector<2x1x128xf32>
    %261 = arith.divf %259, %260 : vector<2x1x128xf32>
    %262 = arith.mulf %257, %257 : vector<2x64x128xf32>
    %cst_116 = arith.constant dense<0.000000e+00> : vector<2x128xf32>
    %263 = vector.multi_reduction <add>, %262, %cst_116 [1] : vector<2x64x128xf32> to vector<2x128xf32>
    %264 = vector.shape_cast %263 : vector<2x128xf32> to vector<2x1x128xf32>
    %cst_117 = arith.constant 6.400000e+01 : f32
    %265 = vector.broadcast %cst_117 : f32 to vector<2x1x128xf32>
    %266 = arith.divf %264, %265 : vector<2x1x128xf32>
    %267 = arith.mulf %261, %261 : vector<2x1x128xf32>
    %268 = arith.subf %266, %267 : vector<2x1x128xf32>
    %cst_118 = arith.constant 0.000000e+00 : f32
    %269 = vector.broadcast %cst_118 : f32 to vector<2x1x128xf32>
    %270 = arith.maximumf %268, %269 : vector<2x1x128xf32>
    %cst_119 = arith.constant 9.99999974E-6 : f32
    %271 = vector.broadcast %cst_119 : f32 to vector<2x1x128xf32>
    %272 = arith.addf %270, %271 : vector<2x1x128xf32>
    %273 = math.rsqrt %272 : vector<2x1x128xf32>
    %274 = arith.mulf %273, %273 : vector<2x1x128xf32>
    %275 = arith.mulf %270, %274 : vector<2x1x128xf32>
    %cst_120 = arith.constant dense<0.000000e+00> : vector<1x128xf32>
    %276 = vector.multi_reduction <add>, %275, %cst_120 [0] : vector<2x1x128xf32> to vector<1x128xf32>
    %277 = vector.shape_cast %276 : vector<1x128xf32> to vector<1x1x128xf32>
    %cst_121 = arith.constant 2.000000e+00 : f32
    %278 = vector.broadcast %cst_121 : f32 to vector<1x1x128xf32>
    %279 = arith.divf %277, %278 : vector<1x1x128xf32>
    %cst_122 = arith.constant 9.99999974E-6 : f32
    %280 = vector.broadcast %cst_122 : f32 to vector<1x1x128xf32>
    %281 = arith.addf %279, %280 : vector<1x1x128xf32>
    %282 = math.rsqrt %281 : vector<1x1x128xf32>
    %283 = vector.shape_cast %254 : vector<1x128xf32> to vector<1x1x128xf32>
    %284 = arith.mulf %282, %283 : vector<1x1x128xf32>
    %285 = vector.broadcast %284 : vector<1x1x128xf32> to vector<2x1x128xf32>
    %286 = arith.mulf %273, %285 : vector<2x1x128xf32>
    %287 = arith.mulf %261, %286 : vector<2x1x128xf32>
    %288 = vector.shape_cast %256 : vector<1x128xf32> to vector<1x1x128xf32>
    %289 = vector.broadcast %288 : vector<1x1x128xf32> to vector<2x1x128xf32>
    %290 = arith.subf %289, %287 : vector<2x1x128xf32>
    %291 = vector.broadcast %286 : vector<2x1x128xf32> to vector<2x64x128xf32>
    %292 = arith.mulf %257, %291 : vector<2x64x128xf32>
    %293 = vector.broadcast %290 : vector<2x1x128xf32> to vector<2x64x128xf32>
    %294 = arith.addf %292, %293 : vector<2x64x128xf32>
    %cst_123 = arith.constant 0.000000e+00 : f32
    %295 = vector.broadcast %cst_123 : f32 to vector<2x64x128xf32>
    %296 = arith.maximumf %294, %295 : vector<2x64x128xf32>
    %297 = vector.shape_cast %296 : vector<2x64x128xf32> to vector<128x128xf32>
    %298 = arith.addf %297, %201 : vector<128x128xf32>
    %299 = vector.shape_cast %298 : vector<128x128xf32> to vector<2x64x128xf32>
    %c0_124 = arith.constant 0 : index
    %c0_125 = arith.constant 0 : index
    %300 = vector.load %arg9[%c0_124, %c0_125] : memref<1x128xf32, #tpu.memory_space<vmem>>, vector<1x128xf32>
    %301 = vector.shape_cast %300 : vector<1x128xf32> to vector<1x1x128xf32>
    %302 = vector.broadcast %301 : vector<1x1x128xf32> to vector<2x64x128xf32>
    %303 = arith.mulf %299, %302 : vector<2x64x128xf32>
    %cst_126 = arith.constant dense<0.000000e+00> : vector<2x64xf32>
    %304 = vector.multi_reduction <add>, %303, %cst_126 [2] : vector<2x64x128xf32> to vector<2x64xf32>
    %c0_127 = arith.constant 0 : index
    %c0_128 = arith.constant 0 : index
    %305 = vector.load %arg10[%c0_127, %c0_128] : memref<1x1xf32, #tpu.memory_space<vmem>>, vector<1x1xf32>
    %306 = vector.broadcast %305 : vector<1x1xf32> to vector<2x64xf32>
    %307 = arith.addf %304, %306 : vector<2x64xf32>
    %c0_129 = arith.constant 0 : index
    %c0_130 = arith.constant 0 : index
    %308 = vector.load %arg11[%c0_129, %c0_130] : memref<2x64xf32, #tpu.memory_space<vmem>>, vector<2x64xf32>
    tpu.vector_store %arg11[%c0_129, %c0_130], %307 {strides = array<i32>} : memref<2x64xf32, #tpu.memory_space<vmem>>, vector<2x64xf32>,
    return
  }
}

</mosaic_0001>

<llo_original>
// kernel: cnnet_forward.1
$region0: #{cnnet_forward.1}
  #allocation0 [shape = 'u32[]', space=smem, size = 0x4, offset = 0x4, fixed_abs, tag = 'smem constant byte address 0x4 - core index']
  #allocation1 [shape = 'u32[144,128]{1,0:T(1,128)}', space=vmem, size = 0x12000, scoped, tag = 'internal scratch']
  #allocation2 [shape = 'f32[1,1]{1,0:T(1,128)S(1)}', space=vmem, size = 0x200, scoped, tag = 'scoped memory for cnnet_forward.1']
  %s0 = inlined_call_operand.vmem [shape: f32[128,8], index: 0, kind: input, shape index: {}]
  %s1 = inlined_call_operand.vmem [shape: f32[8,128], index: 1, kind: input, shape index: {}]
  %s2 = inlined_call_operand.vmem [shape: f32[1,128], index: 2, kind: input, shape index: {}]
  %s3 = inlined_call_operand.vmem [shape: f32[3,128,128], index: 3, kind: input, shape index: {}]
  %s4 = inlined_call_operand.vmem [shape: f32[3,1,128], index: 4, kind: input, shape index: {}]
  %s5 = inlined_call_operand.vmem [shape: f32[3,1,128], index: 5, kind: input, shape index: {}]
  %s6 = inlined_call_operand.vmem [shape: f32[3,128,128], index: 6, kind: input, shape index: {}]
  %s7 = inlined_call_operand.vmem [shape: f32[3,1,128], index: 7, kind: input, shape index: {}]
  %s8 = inlined_call_operand.vmem [shape: f32[3,1,128], index: 8, kind: input, shape index: {}]
  %s9 = inlined_call_operand.vmem [shape: f32[1,128], index: 9, kind: input, shape index: {}]
  %s10 = inlined_call_operand.<no memory space> [shape: f32[1,1], index: 10, kind: input, shape index: {}]
  %s11 = inlined_call_operand.hbm [shape: f32[2,64], index: 11, kind: output, shape index: {}]
  %s12 = sld [smem:[#allocation0]]
  $region54: #{cnnet_forward.1} parent=0
    _
  %s14 = ssub.s32 1, %s12
  %s15 = scalar_select 0, %s14, %s12
  %v16 = vstv %s10
  %17 = vst [vmem:[#allocation2] sm:$0x1] %v16
  $region1: #{cnnet_forward.1} parent=0
    #allocation3 [shape = 'u8[1024]{0}', space=vmem, size = 0x400, scoped, tag = 'output window, operand 0, single buffered']
    #allocation4 [shape = 's32[1]{0}', space=sflag, size = 0x4, scoped, tag = 'scoped memory for cnnet_forward.1']
    %18 = vsyncpa [#allocation4], 0
    // Predicated region
    $region2: #{cnnet_forward.1} parent=1 // pred_check
      _
    $region3: #{cnnet_forward.1} parent=1 // pred_check_branch
      %20 = sbr.rel (0) target = $region5
    $region4: #{cnnet_forward.1} parent=1 // pred_region
      _
    $region5: #{cnnet_forward.1} parent=1 // pred_fallthru
      _
    // Predicated region
    $region6: #{cnnet_forward.1} parent=1 // pred_check
      _
    $region7: #{cnnet_forward.1} parent=1 // pred_check_branch
      %22 = sbr.rel (0) target = $region9
    $region8: #{cnnet_forward.1} parent=1 // pred_region
      _
    $region9: #{cnnet_forward.1} parent=1 // pred_fallthru
      _
    // Predicated region
    $region10: #{cnnet_forward.1} parent=1 // pred_check
      _
    $region11: #{cnnet_forward.1} parent=1 // pred_check_branch
      %24 = sbr.rel (0) target = $region13
    $region12: #{cnnet_forward.1} parent=1 // pred_region
      _
    $region13: #{cnnet_forward.1} parent=1 // pred_fallthru
      _
    // Predicated region
    $region14: #{cnnet_forward.1} parent=1 // pred_check
      _
    $region15: #{cnnet_forward.1} parent=1 // pred_check_branch
      %26 = sbr.rel (0) target = $region17
    $region16: #{cnnet_forward.1} parent=1 // pred_region
      _
    $region17: #{cnnet_forward.1} parent=1 // pred_fallthru
      _
    // Predicated region
    $region18: #{cnnet_forward.1} parent=1 // pred_check
      _
    $region19: #{cnnet_forward.1} parent=1 // pred_check_branch
      %28 = sbr.rel (0) target = $region21
    $region20: #{cnnet_forward.1} parent=1 // pred_region
      _
    $region21: #{cnnet_forward.1} parent=1 // pred_fallthru
      _
    // Predicated region
    $region22: #{cnnet_forward.1} parent=1 // pred_check
      _
    $region23: #{cnnet_forward.1} parent=1 // pred_check_branch
      %30 = sbr.rel (0) target = $region25
    $region24: #{cnnet_forward.1} parent=1 // pred_region
      _
    $region25: #{cnnet_forward.1} parent=1 // pred_fallthru
      _
    // Predicated region
    $region26: #{cnnet_forward.1} parent=1 // pred_check
      _
    $region27: #{cnnet_forward.1} parent=1 // pred_check_branch
      %32 = sbr.rel (0) target = $region29
    $region28: #{cnnet_forward.1} parent=1 // pred_region
      _
    $region29: #{cnnet_forward.1} parent=1 // pred_fallthru
      _
    // Predicated region
    $region30: #{cnnet_forward.1} parent=1 // pred_check
      _
    $region31: #{cnnet_forward.1} parent=1 // pred_check_branch
      %34 = sbr.rel (0) target = $region33
    $region32: #{cnnet_forward.1} parent=1 // pred_region
      _
    $region33: #{cnnet_forward.1} parent=1 // pred_fallthru
      _
    // Predicated region
    $region34: #{cnnet_forward.1} parent=1 // pred_check
      _
    $region35: #{cnnet_forward.1} parent=1 // pred_check_branch
      %36 = sbr.rel (0) target = $region37
    $region36: #{cnnet_forward.1} parent=1 // pred_region
      _
    $region37: #{cnnet_forward.1} parent=1 // pred_fallthru
      _
    // Predicated region
    $region38: #{cnnet_forward.1} parent=1 // pred_check
      _
    $region39: #{cnnet_forward.1} parent=1 // pred_check_branch
      %38 = sbr.rel (0) target = $region41
    $region40: #{cnnet_forward.1} parent=1 // pred_region
      _
    $region41: #{cnnet_forward.1} parent=1 // pred_fallthru
      _
    // Predicated region
    $region42: #{cnnet_forward.1} parent=1 // pred_check
      _
    $region43: #{cnnet_forward.1} parent=1 // pred_check_branch
      %40 = sbr.rel (0) target = $region45
    $region44: #{cnnet_forward.1} parent=1 // pred_region
      _
    $region45: #{cnnet_forward.1} parent=1 // pred_fallthru
      _
    %v41 = vld [vmem:[%s0] sm:$0xff]
    %v42 = vld [vmem:[%s0 + $0x8] sm:$0xff]
    %v43 = vld [vmem:[%s0 + $0x10] sm:$0xff]
    %v44 = vld [vmem:[%s0 + $0x18] sm:$0xff]
    %v45 = vld [vmem:[%s0 + $0x20] sm:$0xff]
    %v46 = vld [vmem:[%s0 + $0x28] sm:$0xff]
    %v47 = vld [vmem:[%s0 + $0x30] sm:$0xff]
    %v48 = vld [vmem:[%s0 + $0x38] sm:$0xff]
    %v49 = vld [vmem:[%s0 + $0x40] sm:$0xff]
    %v50 = vld [vmem:[%s0 + $0x48] sm:$0xff]
    %v51 = vld [vmem:[%s0 + $0x50] sm:$0xff]
    %v52 = vld [vmem:[%s0 + $0x58] sm:$0xff]
    %v53 = vld [vmem:[%s0 + $0x60] sm:$0xff]
    %v54 = vld [vmem:[%s0 + $0x68] sm:$0xff]
    %v55 = vld [vmem:[%s0 + $0x70] sm:$0xff]
    %v56 = vld [vmem:[%s0 + $0x78] sm:$0xff]
    %v57 = vld [vmem:[%s1] sm:$0xff]
    %v58 = vld [vmem:[%s2] sm:$0x1]
    %v60 = vlaneseq
    %v61 = vshrl.u32 %v60, 7
    %v62 = vsub.s32 0, %v61
    %v63 = vrot.slane %v58, %v62
    %vm65 = vcmask 64512
    %v67 = vsel %vm65, %v41, 0
    %v70 = vsel %vm65, %v42, 0
    %v73 = vsel %vm65, %v43, 0
    %v76 = vsel %vm65, %v44, 0
    %v79 = vsel %vm65, %v45, 0
    %v82 = vsel %vm65, %v46, 0
    %v85 = vsel %vm65, %v47, 0
    %v88 = vsel %vm65, %v48, 0
    %v91 = vsel %vm65, %v49, 0
    %v94 = vsel %vm65, %v50, 0
    %v97 = vsel %vm65, %v51, 0
    %v100 = vsel %vm65, %v52, 0
    %v103 = vsel %vm65, %v53, 0
    %v106 = vsel %vm65, %v54, 0
    %v109 = vsel %vm65, %v55, 0
    %v112 = vsel %vm65, %v56, 0
    %114 = vmatprep.subr.mxu0 0.0
    %115 = vmatpush1.msra.mxu0 0.0
    %116 = vmatprep.subr.mxu0 0.0
    %117 = vmatpush1.msra.mxu0 0.0
    %118 = vmatprep.subr.mxu0 0.0
    %119 = vmatpush1.msra.mxu0 0.0
    %120 = vmatprep.subr.mxu0 0.0
    %121 = vmatpush1.msra.mxu0 0.0
    %122 = vmatprep.subr.mxu0 0.0
    %123 = vmatpush1.msra.mxu0 0.0
    %124 = vmatprep.subr.mxu0 0.0
    %125 = vmatpush1.msra.mxu0 0.0
    %126 = vmatprep.subr.mxu0 0.0
    %127 = vmatpush1.msra.mxu0 0.0
    %128 = vmatprep.subr.mxu0 0.0
    %129 = vmatpush1.msra.mxu0 0.0
    %130 = vmatprep.subr.mxu0 0.0
    %131 = vmatpush1.msra.mxu0 0.0
    %132 = vmatprep.subr.mxu0 0.0
    %133 = vmatpush1.msra.mxu0 0.0
    %134 = vmatprep.subr.mxu0 0.0
    %135 = vmatpush1.msra.mxu0 0.0
    %136 = vmatprep.subr.mxu0 0.0
    %137 = vmatpush1.msra.mxu0 0.0
    %138 = vmatprep.subr.mxu0 0.0
    %139 = vmatpush1.msra.mxu0 0.0
    %140 = vmatprep.subr.mxu0 0.0
    %141 = vmatpush1.msra.mxu0 0.0
    %142 = vmatprep.subr.mxu0 0.0
    %143 = vmatpush1.msra.mxu0 0.0
    %144 = vmatprep.subr.mxu0 0.0
    %145 = vmatpush1.msra.mxu0 %v57
    %146 = vmatprep.subr.mxu0 0.0
    %147 = vmatpush2.msra.mxu0 0.0
    %148 = vmatprep.subr.mxu0 0.0
    %149 = vmatpush2.msra.mxu0 0.0
    %150 = vmatprep.subr.mxu0 0.0
    %151 = vmatpush2.msra.mxu0 0.0
    %152 = vmatprep.subr.mxu0 0.0
    %153 = vmatpush2.msra.mxu0 0.0
    %154 = vmatprep.subr.mxu0 0.0
    %155 = vmatpush2.msra.mxu0 0.0
    %156 = vmatprep.subr.mxu0 0.0
    %157 = vmatpush2.msra.mxu0 0.0
    %158 = vmatprep.subr.mxu0 0.0
    %159 = vmatpush2.msra.mxu0 0.0
    %160 = vmatprep.subr.mxu0 0.0
    %161 = vmatpush2.msra.mxu0 0.0
    %162 = vmatprep.subr.mxu0 0.0
    %163 = vmatpush2.msra.mxu0 0.0
    %164 = vmatprep.subr.mxu0 0.0
    %165 = vmatpush2.msra.mxu0 0.0
    %166 = vmatprep.subr.mxu0 0.0
    %167 = vmatpush2.msra.mxu0 0.0
    %168 = vmatprep.subr.mxu0 0.0
    %169 = vmatpush2.msra.mxu0 0.0
    %170 = vmatprep.subr.mxu0 0.0
    %171 = vmatpush2.msra.mxu0 0.0
    %172 = vmatprep.subr.mxu0 0.0
    %173 = vmatpush2.msra.mxu0 0.0
    %174 = vmatprep.subr.mxu0 0.0
    %175 = vmatpush2.msra.mxu0 0.0
    %176 = vmatprep.subr.mxu0 0.0
    %177 = vmatpush2.msra.mxu0 0.0
    %178 = vmatprep.mubr.f32.mxu0 0.0
    %179 = vmatmul.mubr.f32.gmra.mxu0 %v67
    %v180 = vpop.f32.mrf.mxu0
    %v181 = vadd.f32 %v63, %v180
    %v182 = vpop.f32.mrf.mxu0
    %183 = vmatprep.mubr.f32.mxu0 0.0
    %184 = vmatmul.mubr.f32.gmra.mxu0 %v70
    %v185 = vpop.f32.mrf.mxu0
    %v186 = vadd.f32 %v63, %v185
    %v187 = vpop.f32.mrf.mxu0
    %188 = vmatprep.mubr.f32.mxu0 0.0
    %189 = vmatmul.mubr.f32.gmra.mxu0 %v73
    %v190 = vpop.f32.mrf.mxu0
    %v191 = vadd.f32 %v63, %v190
    %v192 = vpop.f32.mrf.mxu0
    %193 = vmatprep.mubr.f32.mxu0 0.0
    %194 = vmatmul.mubr.f32.gmra.mxu0 %v76
    %v195 = vpop.f32.mrf.mxu0
    %v196 = vadd.f32 %v63, %v195
    %v197 = vpop.f32.mrf.mxu0
    %198 = vmatprep.mubr.f32.mxu0 0.0
    %199 = vmatmul.mubr.f32.gmra.mxu0 %v79
    %v200 = vpop.f32.mrf.mxu0
    %v201 = vadd.f32 %v63, %v200
    %v202 = vpop.f32.mrf.mxu0
    %203 = vmatprep.mubr.f32.mxu0 0.0
    %204 = vmatmul.mubr.f32.gmra.mxu0 %v82
    %v205 = vpop.f32.mrf.mxu0
    %v206 = vadd.f32 %v63, %v205
    %v207 = vpop.f32.mrf.mxu0
    %208 = vmatprep.mubr.f32.mxu0 0.0
    %209 = vmatmul.mubr.f32.gmra.mxu0 %v85
    %v210 = vpop.f32.mrf.mxu0
    %v211 = vadd.f32 %v63, %v210
    %v212 = vpop.f32.mrf.mxu0
    %213 = vmatprep.mubr.f32.mxu0 0.0
    %214 = vmatmul.mubr.f32.gmra.mxu0 %v88
    %v215 = vpop.f32.mrf.mxu0
    %v216 = vadd.f32 %v63, %v215
    %v217 = vpop.f32.mrf.mxu0
    %218 = vmatprep.mubr.f32.mxu0 0.0
    %219 = vmatmul.mubr.f32.gmra.mxu0 %v91
    %v220 = vpop.f32.mrf.mxu0
    %v221 = vadd.f32 %v63, %v220
    %v222 = vpop.f32.mrf.mxu0
    %223 = vmatprep.mubr.f32.mxu0 0.0
    %224 = vmatmul.mubr.f32.gmra.mxu0 %v94
    %v225 = vpop.f32.mrf.mxu0
    %v226 = vadd.f32 %v63, %v225
    %v227 = vpop.f32.mrf.mxu0
    %228 = vmatprep.mubr.f32.mxu0 0.0
    %229 = vmatmul.mubr.f32.gmra.mxu0 %v97
    %v230 = vpop.f32.mrf.mxu0
    %v231 = vadd.f32 %v63, %v230
    %v232 = vpop.f32.mrf.mxu0
    %233 = vmatprep.mubr.f32.mxu0 0.0
    %234 = vmatmul.mubr.f32.gmra.mxu0 %v100
    %v235 = vpop.f32.mrf.mxu0
    %v236 = vadd.f32 %v63, %v235
    %v237 = vpop.f32.mrf.mxu0
    %238 = vmatprep.mubr.f32.mxu0 0.0
    %239 = vmatmul.mubr.f32.gmra.mxu0 %v103
    %v240 = vpop.f32.mrf.mxu0
    %v241 = vadd.f32 %v63, %v240
    %v242 = vpop.f32.mrf.mxu0
    %243 = vmatprep.mubr.f32.mxu0 0.0
    %244 = vmatmul.mubr.f32.gmra.mxu0 %v106
    %v245 = vpop.f32.mrf.mxu0
    %v246 = vadd.f32 %v63, %v245
    %v247 = vpop.f32.mrf.mxu0
    %248 = vmatprep.mubr.f32.mxu0 0.0
    %249 = vmatmul.mubr.f32.gmra.mxu0 %v109
    %v250 = vpop.f32.mrf.mxu0
    %v251 = vadd.f32 %v63, %v250
    %v252 = vpop.f32.mrf.mxu0
    %253 = vmatprep.mubr.f32.mxu0 0.0
    %254 = vmatmul.mubr.f32.gmra.mxu0 %v112
    %v255 = vpop.f32.mrf.mxu0
    %v256 = vadd.f32 %v63, %v255
    %v257 = vpop.f32.mrf.mxu0
    %258 = vdwg.mxu0
    %v259 = vmax.f32 %v181, 0.0
    %v260 = vmax.f32 %v186, 0.0
    %v261 = vmax.f32 %v191, 0.0
    %v262 = vmax.f32 %v196, 0.0
    %v263 = vmax.f32 %v201, 0.0
    %v264 = vmax.f32 %v206, 0.0
    %v265 = vmax.f32 %v211, 0.0
    %v266 = vmax.f32 %v216, 0.0
    %v267 = vmax.f32 %v221, 0.0
    %v268 = vmax.f32 %v226, 0.0
    %v269 = vmax.f32 %v231, 0.0
    %v270 = vmax.f32 %v236, 0.0
    %v271 = vmax.f32 %v241, 0.0
    %v272 = vmax.f32 %v246, 0.0
    %v273 = vmax.f32 %v251, 0.0
    %v274 = vmax.f32 %v256, 0.0
    %v275 = vld [vmem:[%s3] sm:$0xff]
    %v276 = vld [vmem:[%s3 + $0x8] sm:$0xff]
    %v277 = vld [vmem:[%s3 + $0x10] sm:$0xff]
    %v278 = vld [vmem:[%s3 + $0x18] sm:$0xff]
    %v279 = vld [vmem:[%s3 + $0x20] sm:$0xff]
    %v280 = vld [vmem:[%s3 + $0x28] sm:$0xff]
    %v281 = vld [vmem:[%s3 + $0x30] sm:$0xff]
    %v282 = vld [vmem:[%s3 + $0x38] sm:$0xff]
    %v283 = vld [vmem:[%s3 + $0x40] sm:$0xff]
    %v284 = vld [vmem:[%s3 + $0x48] sm:$0xff]
    %v285 = vld [vmem:[%s3 + $0x50] sm:$0xff]
    %v286 = vld [vmem:[%s3 + $0x58] sm:$0xff]
    %v287 = vld [vmem:[%s3 + $0x60] sm:$0xff]
    %v288 = vld [vmem:[%s3 + $0x68] sm:$0xff]
    %v289 = vld [vmem:[%s3 + $0x70] sm:$0xff]
    %v290 = vld [vmem:[%s3 + $0x78] sm:$0xff]
    %291 = vmatprep.subr.mxu0 0.0
    %292 = vmatpush1.msra.mxu0 %v290
    %293 = vmatprep.subr.mxu0 0.0
    %294 = vmatpush1.msra.mxu0 %v289
    %295 = vmatprep.subr.mxu0 0.0
    %296 = vmatpush1.msra.mxu0 %v288
    %297 = vmatprep.subr.mxu0 0.0
    %298 = vmatpush1.msra.mxu0 %v287
    %299 = vmatprep.subr.mxu0 0.0
    %300 = vmatpush1.msra.mxu0 %v286
    %301 = vmatprep.subr.mxu0 0.0
    %302 = vmatpush1.msra.mxu0 %v285
    %303 = vmatprep.subr.mxu0 0.0
    %304 = vmatpush1.msra.mxu0 %v284
    %305 = vmatprep.subr.mxu0 0.0
    %306 = vmatpush1.msra.mxu0 %v283
    %307 = vmatprep.subr.mxu0 0.0
    %308 = vmatpush1.msra.mxu0 %v282
    %309 = vmatprep.subr.mxu0 0.0
    %310 = vmatpush1.msra.mxu0 %v281
    %311 = vmatprep.subr.mxu0 0.0
    %312 = vmatpush1.msra.mxu0 %v280
    %313 = vmatprep.subr.mxu0 0.0
    %314 = vmatpush1.msra.mxu0 %v279
    %315 = vmatprep.subr.mxu0 0.0
    %316 = vmatpush1.msra.mxu0 %v278
    %317 = vmatprep.subr.mxu0 0.0
    %318 = vmatpush1.msra.mxu0 %v277
    %319 = vmatprep.subr.mxu0 0.0
    %320 = vmatpush1.msra.mxu0 %v276
    %321 = vmatprep.subr.mxu0 0.0
    %322 = vmatpush1.msra.mxu0 %v275
    %323 = vmatprep.subr.mxu0 0.0
    %324 = vmatpush2.msra.mxu0 0.0
    %325 = vmatprep.subr.mxu0 0.0
    %326 = vmatpush2.msra.mxu0 0.0
    %327 = vmatprep.subr.mxu0 0.0
    %328 = vmatpush2.msra.mxu0 0.0
    %329 = vmatprep.subr.mxu0 0.0
    %330 = vmatpush2.msra.mxu0 0.0
    %331 = vmatprep.subr.mxu0 0.0
    %332 = vmatpush2.msra.mxu0 0.0
    %333 = vmatprep.subr.mxu0 0.0
    %334 = vmatpush2.msra.mxu0 0.0
    %335 = vmatprep.subr.mxu0 0.0
    %336 = vmatpush2.msra.mxu0 0.0
    %337 = vmatprep.subr.mxu0 0.0
    %338 = vmatpush2.msra.mxu0 0.0
    %339 = vmatprep.subr.mxu0 0.0
    %340 = vmatpush2.msra.mxu0 0.0
    %341 = vmatprep.subr.mxu0 0.0
    %342 = vmatpush2.msra.mxu0 0.0
    %343 = vmatprep.subr.mxu0 0.0
    %344 = vmatpush2.msra.mxu0 0.0
    %345 = vmatprep.subr.mxu0 0.0
    %346 = vmatpush2.msra.mxu0 0.0
    %347 = vmatprep.subr.mxu0 0.0
    %348 = vmatpush2.msra.mxu0 0.0
    %349 = vmatprep.subr.mxu0 0.0
    %350 = vmatpush2.msra.mxu0 0.0
    %351 = vmatprep.subr.mxu0 0.0
    %352 = vmatpush2.msra.mxu0 0.0
    %353 = vmatprep.subr.mxu0 0.0
    %354 = vmatpush2.msra.mxu0 0.0
    %355 = vmatprep.mubr.f32.mxu0 0.0
    %356 = vmatmul.mubr.f32.gmra.mxu0 %v259
    %v357 = vpop.f32.mrf.mxu0
    %v358 = vadd.f32 0.0, %v357
    %v359 = vpop.f32.mrf.mxu0
    %360 = vmatprep.mubr.f32.mxu0 0.0
    %361 = vmatmul.mubr.f32.gmra.mxu0 %v260
    %v362 = vpop.f32.mrf.mxu0
    %v363 = vadd.f32 0.0, %v362
    %v364 = vpop.f32.mrf.mxu0
    %365 = vmatprep.mubr.f32.mxu0 0.0
    %366 = vmatmul.mubr.f32.gmra.mxu0 %v261
    %v367 = vpop.f32.mrf.mxu0
    %v368 = vadd.f32 0.0, %v367
    %v369 = vpop.f32.mrf.mxu0
    %370 = vmatprep.mubr.f32.mxu0 0.0
    %371 = vmatmul.mubr.f32.gmra.mxu0 %v262
    %v372 = vpop.f32.mrf.mxu0
    %v373 = vadd.f32 0.0, %v372
    %v374 = vpop.f32.mrf.mxu0
    %375 = vmatprep.mubr.f32.mxu0 0.0
    %376 = vmatmul.mubr.f32.gmra.mxu0 %v263
    %v377 = vpop.f32.mrf.mxu0
    %v378 = vadd.f32 0.0, %v377
    %v379 = vpop.f32.mrf.mxu0
    %380 = vmatprep.mubr.f32.mxu0 0.0
    %381 = vmatmul.mubr.f32.gmra.mxu0 %v264
    %v382 = vpop.f32.mrf.mxu0
    %v383 = vadd.f32 0.0, %v382
    %v384 = vpop.f32.mrf.mxu0
    %385 = vmatprep.mubr.f32.mxu0 0.0
    %386 = vmatmul.mubr.f32.gmra.mxu0 %v265
    %v387 = vpop.f32.mrf.mxu0
    %v388 = vadd.f32 0.0, %v387
    %v389 = vpop.f32.mrf.mxu0
    %390 = vmatprep.mubr.f32.mxu0 0.0
    %391 = vmatmul.mubr.f32.gmra.mxu0 %v266
    %v392 = vpop.f32.mrf.mxu0
    %v393 = vadd.f32 0.0, %v392
    %v394 = vpop.f32.mrf.mxu0
    %395 = vmatprep.mubr.f32.mxu0 0.0
    %396 = vmatmul.mubr.f32.gmra.mxu0 %v267
    %v397 = vpop.f32.mrf.mxu0
    %v398 = vadd.f32 0.0, %v397
    %v399 = vpop.f32.mrf.mxu0
    %400 = vmatprep.mubr.f32.mxu0 0.0
    %401 = vmatmul.mubr.f32.gmra.mxu0 %v268
    %v402 = vpop.f32.mrf.mxu0
    %v403 = vadd.f32 0.0, %v402
    %v404 = vpop.f32.mrf.mxu0
    %405 = vmatprep.mubr.f32.mxu0 0.0
    %406 = vmatmul.mubr.f32.gmra.mxu0 %v269
    %v407 = vpop.f32.mrf.mxu0
    %v408 = vadd.f32 0.0, %v407
    %v409 = vpop.f32.mrf.mxu0
    %410 = vmatprep.mubr.f32.mxu0 0.0
    %411 = vmatmul.mubr.f32.gmra.mxu0 %v270
    %v412 = vpop.f32.mrf.mxu0
    %v413 = vadd.f32 0.0, %v412
    %v414 = vpop.f32.mrf.mxu0
    %415 = vmatprep.mubr.f32.mxu0 0.0
    %416 = vmatmul.mubr.f32.gmra.mxu0 %v271
    %v417 = vpop.f32.mrf.mxu0
    %v418 = vadd.f32 0.0, %v417
    %v419 = vpop.f32.mrf.mxu0
    %420 = vmatprep.mubr.f32.mxu0 0.0
    %421 = vmatmul.mubr.f32.gmra.mxu0 %v272
    %v422 = vpop.f32.mrf.mxu0
    %v423 = vadd.f32 0.0, %v422
    %v424 = vpop.f32.mrf.mxu0
    %425 = vmatprep.mubr.f32.mxu0 0.0
    %426 = vmatmul.mubr.f32.gmra.mxu0 %v273
    %v427 = vpop.f32.mrf.mxu0
    %v428 = vadd.f32 0.0, %v427
    %v429 = vpop.f32.mrf.mxu0
    %430 = vmatprep.mubr.f32.mxu0 0.0
    %431 = vmatmul.mubr.f32.gmra.mxu0 %v274
    %v432 = vpop.f32.mrf.mxu0
    %v433 = vadd.f32 0.0, %v432
    %v434 = vpop.f32.mrf.mxu0
    %435 = vdwg.mxu0
    %v436 = vld [vmem:[%s4] sm:$0x1]
    %v437 = vld [vmem:[%s5] sm:$0x1]
    %v438 = vadd.f32 %v358, %v363
    %v439 = vadd.f32 %v438, %v368
    %v440 = vadd.f32 %v439, %v373
    %v441 = vadd.f32 %v440, %v378
    %v442 = vadd.f32 %v441, %v383
    %v443 = vadd.f32 %v442, %v388
    %v444 = vadd.f32 %v443, %v393
    %v445 = vrot.slane %v444, 4
    %v446 = vadd.f32 %v444, %v445
    %v447 = vrot.slane %v446, 2
    %v448 = vadd.f32 %v446, %v447
    %v449 = vrot.slane %v448, 1
    %v450 = vadd.f32 %v448, %v449
    %v451 = vadd.f32 %v398, %v403
    %v452 = vadd.f32 %v451, %v408
    %v453 = vadd.f32 %v452, %v413
    %v454 = vadd.f32 %v453, %v418
    %v455 = vadd.f32 %v454, %v423
    %v456 = vadd.f32 %v455, %v428
    %v457 = vadd.f32 %v456, %v433
    %v458 = vrot.slane %v457, 4
    %v459 = vadd.f32 %v457, %v458
    %v460 = vrot.slane %v459, 2
    %v461 = vadd.f32 %v459, %v460
    %v462 = vrot.slane %v461, 1
    %v463 = vadd.f32 %v461, %v462
    %v464 = vrcp.pop 64.0
    %v465 = vmul.f32 %v450, %v464
    %v466 = vmul.f32 %v463, %v464
    %v467 = vmul.f32 %v358, %v358
    %v468 = vmul.f32 %v363, %v363
    %v469 = vmul.f32 %v368, %v368
    %v470 = vmul.f32 %v373, %v373
    %v471 = vmul.f32 %v378, %v378
    %v472 = vmul.f32 %v383, %v383
    %v473 = vmul.f32 %v388, %v388
    %v474 = vmul.f32 %v393, %v393
    %v475 = vmul.f32 %v398, %v398
    %v476 = vmul.f32 %v403, %v403
    %v477 = vmul.f32 %v408, %v408
    %v478 = vmul.f32 %v413, %v413
    %v479 = vmul.f32 %v418, %v418
    %v480 = vmul.f32 %v423, %v423
    %v481 = vmul.f32 %v428, %v428
    %v482 = vmul.f32 %v433, %v433
    %v483 = vadd.f32 %v467, %v468
    %v484 = vadd.f32 %v483, %v469
    %v485 = vadd.f32 %v484, %v470
    %v486 = vadd.f32 %v485, %v471
    %v487 = vadd.f32 %v486, %v472
    %v488 = vadd.f32 %v487, %v473
    %v489 = vadd.f32 %v488, %v474
    %v490 = vrot.slane %v489, 4
    %v491 = vadd.f32 %v489, %v490
    %v492 = vrot.slane %v491, 2
    %v493 = vadd.f32 %v491, %v492
    %v494 = vrot.slane %v493, 1
    %v495 = vadd.f32 %v493, %v494
    %v496 = vadd.f32 %v475, %v476
    %v497 = vadd.f32 %v496, %v477
    %v498 = vadd.f32 %v497, %v478
    %v499 = vadd.f32 %v498, %v479
    %v500 = vadd.f32 %v499, %v480
    %v501 = vadd.f32 %v500, %v481
    %v502 = vadd.f32 %v501, %v482
    %v503 = vrot.slane %v502, 4
    %v504 = vadd.f32 %v502, %v503
    %v505 = vrot.slane %v504, 2
    %v506 = vadd.f32 %v504, %v505
    %v507 = vrot.slane %v506, 1
    %v508 = vadd.f32 %v506, %v507
    %v509 = vmul.f32 %v495, %v464
    %v510 = vmul.f32 %v508, %v464
    %v511 = vmul.f32 %v465, %v465
    %v512 = vmul.f32 %v466, %v466
    %v513 = vsub.f32 %v509, %v511
    %v514 = vsub.f32 %v510, %v512
    %v515 = vmax.f32 %v513, 0.0
    %v516 = vmax.f32 %v514, 0.0
    %v517 = vadd.f32 %v515, 1e-05
    %v518 = vadd.f32 %v516, 1e-05
    %v519 = vrsqrt.pop %v517
    %v520 = vrsqrt.pop %v518
    %v521 = vmul.f32 %v519, %v519
    %v522 = vmul.f32 %v520, %v520
    %v523 = vmul.f32 %v515, %v521
    %v524 = vmul.f32 %v516, %v522
    %v525 = vadd.f32 %v523, %v524
    %v526 = vrcp.pop 2.0
    %v527 = vmul.f32 %v525, %v526
    %v528 = vadd.f32 %v527, 1e-05
    %v529 = vrsqrt.pop %v528
    %v530 = vmul.f32 %v529, %v436
    %v531 = vmul.f32 %v519, %v530
    %v532 = vmul.f32 %v520, %v530
    %v533 = vmul.f32 %v465, %v531
    %v534 = vmul.f32 %v466, %v532
    %v535 = vsub.f32 %v437, %v533
    %v536 = vsub.f32 %v437, %v534
    %v537 = vlaneseq
    %v538 = vshrl.u32 %v537, 7
    %v539 = vsub.s32 0, %v538
    %v540 = vrot.slane %v531, %v539
    %v541 = vlaneseq
    %v542 = vshrl.u32 %v541, 7
    %v543 = vsub.s32 0, %v542
    %v544 = vrot.slane %v532, %v543
    %v545 = vmul.f32 %v358, %v540
    %v546 = vmul.f32 %v363, %v540
    %v547 = vmul.f32 %v368, %v540
    %v548 = vmul.f32 %v373, %v540
    %v549 = vmul.f32 %v378, %v540
    %v550 = vmul.f32 %v383, %v540
    %v551 = vmul.f32 %v388, %v540
    %v552 = vmul.f32 %v393, %v540
    %v553 = vmul.f32 %v398, %v544
    %v554 = vmul.f32 %v403, %v544
    %v555 = vmul.f32 %v408, %v544
    %v556 = vmul.f32 %v413, %v544
    %v557 = vmul.f32 %v418, %v544
    %v558 = vmul.f32 %v423, %v544
    %v559 = vmul.f32 %v428, %v544
    %v560 = vmul.f32 %v433, %v544
    %v563 = vlaneseq
    %v564 = vshrl.u32 %v563, 7
    %v565 = vsub.s32 0, %v564
    %v566 = vrot.slane %v535, %v565
    %v567 = vlaneseq
    %v568 = vshrl.u32 %v567, 7
    %v569 = vsub.s32 0, %v568
    %v570 = vrot.slane %v536, %v569
    %v573 = vadd.f32 %v545, %v566
    %v574 = vadd.f32 %v546, %v566
    %v575 = vadd.f32 %v547, %v566
    %v576 = vadd.f32 %v548, %v566
    %v577 = vadd.f32 %v549, %v566
    %v578 = vadd.f32 %v550, %v566
    %v579 = vadd.f32 %v551, %v566
    %v580 = vadd.f32 %v552, %v566
    %v581 = vadd.f32 %v553, %v570
    %v582 = vadd.f32 %v554, %v570
    %v583 = vadd.f32 %v555, %v570
    %v584 = vadd.f32 %v556, %v570
    %v585 = vadd.f32 %v557, %v570
    %v586 = vadd.f32 %v558, %v570
    %v587 = vadd.f32 %v559, %v570
    %v588 = vadd.f32 %v560, %v570
    %v589 = vmax.f32 %v573, 0.0
    %v590 = vmax.f32 %v574, 0.0
    %v591 = vmax.f32 %v575, 0.0
    %v592 = vmax.f32 %v576, 0.0
    %v593 = vmax.f32 %v577, 0.0
    %v594 = vmax.f32 %v578, 0.0
    %v595 = vmax.f32 %v579, 0.0
    %v596 = vmax.f32 %v580, 0.0
    %v597 = vmax.f32 %v581, 0.0
    %v598 = vmax.f32 %v582, 0.0
    %v599 = vmax.f32 %v583, 0.0
    %v600 = vmax.f32 %v584, 0.0
    %v601 = vmax.f32 %v585, 0.0
    %v602 = vmax.f32 %v586, 0.0
    %v603 = vmax.f32 %v587, 0.0
    %v604 = vmax.f32 %v588, 0.0
    %v605 = vld [vmem:[%s6] sm:$0xff]
    %v606 = vld [vmem:[%s6 + $0x8] sm:$0xff]
    %v607 = vld [vmem:[%s6 + $0x10] sm:$0xff]
    %v608 = vld [vmem:[%s6 + $0x18] sm:$0xff]
    %v609 = vld [vmem:[%s6 + $0x20] sm:$0xff]
    %v610 = vld [vmem:[%s6 + $0x28] sm:$0xff]
    %v611 = vld [vmem:[%s6 + $0x30] sm:$0xff]
    %v612 = vld [vmem:[%s6 + $0x38] sm:$0xff]
    %v613 = vld [vmem:[%s6 + $0x40] sm:$0xff]
    %v614 = vld [vmem:[%s6 + $0x48] sm:$0xff]
    %v615 = vld [vmem:[%s6 + $0x50] sm:$0xff]
    %v616 = vld [vmem:[%s6 + $0x58] sm:$0xff]
    %v617 = vld [vmem:[%s6 + $0x60] sm:$0xff]
    %v618 = vld [vmem:[%s6 + $0x68] sm:$0xff]
    %v619 = vld [vmem:[%s6 + $0x70] sm:$0xff]
    %v620 = vld [vmem:[%s6 + $0x78] sm:$0xff]
    %621 = vmatprep.subr.mxu0 0.0
    %622 = vmatpush1.msra.mxu0 %v620
    %623 = vmatprep.subr.mxu0 0.0
    %624 = vmatpush1.msra.mxu0 %v619
    %625 = vmatprep.subr.mxu0 0.0
    %626 = vmatpush1.msra.mxu0 %v618
    %627 = vmatprep.subr.mxu0 0.0
    %628 = vmatpush1.msra.mxu0 %v617
    %629 = vmatprep.subr.mxu0 0.0
    %630 = vmatpush1.msra.mxu0 %v616
    %631 = vmatprep.subr.mxu0 0.0
    %632 = vmatpush1.msra.mxu0 %v615
    %633 = vmatprep.subr.mxu0 0.0
    %634 = vmatpush1.msra.mxu0 %v614
    %635 = vmatprep.subr.mxu0 0.0
    %636 = vmatpush1.msra.mxu0 %v613
    %637 = vmatprep.subr.mxu0 0.0
    %638 = vmatpush1.msra.mxu0 %v612
    %639 = vmatprep.subr.mxu0 0.0
    %640 = vmatpush1.msra.mxu0 %v611
    %641 = vmatprep.subr.mxu0 0.0
    %642 = vmatpush1.msra.mxu0 %v610
    %643 = vmatprep.subr.mxu0 0.0
    %644 = vmatpush1.msra.mxu0 %v609
    %645 = vmatprep.subr.mxu0 0.0
    %646 = vmatpush1.msra.mxu0 %v608
    %647 = vmatprep.subr.mxu0 0.0
    %648 = vmatpush1.msra.mxu0 %v607
    %649 = vmatprep.subr.mxu0 0.0
    %650 = vmatpush1.msra.mxu0 %v606
    %651 = vmatprep.subr.mxu0 0.0
    %652 = vmatpush1.msra.mxu0 %v605
    %653 = vmatprep.subr.mxu0 0.0
    %654 = vmatpush2.msra.mxu0 0.0
    %655 = vmatprep.subr.mxu0 0.0
    %656 = vmatpush2.msra.mxu0 0.0
    %657 = vmatprep.subr.mxu0 0.0
    %658 = vmatpush2.msra.mxu0 0.0
    %659 = vmatprep.subr.mxu0 0.0
    %660 = vmatpush2.msra.mxu0 0.0
    %661 = vmatprep.subr.mxu0 0.0
    %662 = vmatpush2.msra.mxu0 0.0
    %663 = vmatprep.subr.mxu0 0.0
    %664 = vmatpush2.msra.mxu0 0.0
    %665 = vmatprep.subr.mxu0 0.0
    %666 = vmatpush2.msra.mxu0 0.0
    %667 = vmatprep.subr.mxu0 0.0
    %668 = vmatpush2.msra.mxu0 0.0
    %669 = vmatprep.subr.mxu0 0.0
    %670 = vmatpush2.msra.mxu0 0.0
    %671 = vmatprep.subr.mxu0 0.0
    %672 = vmatpush2.msra.mxu0 0.0
    %673 = vmatprep.subr.mxu0 0.0
    %674 = vmatpush2.msra.mxu0 0.0
    %675 = vmatprep.subr.mxu0 0.0
    %676 = vmatpush2.msra.mxu0 0.0
    %677 = vmatprep.subr.mxu0 0.0
    %678 = vmatpush2.msra.mxu0 0.0
    %679 = vmatprep.subr.mxu0 0.0
    %680 = vmatpush2.msra.mxu0 0.0
    %681 = vmatprep.subr.mxu0 0.0
    %682 = vmatpush2.msra.mxu0 0.0
    %683 = vmatprep.subr.mxu0 0.0
    %684 = vmatpush2.msra.mxu0 0.0
    %685 = vmatprep.mubr.f32.mxu0 0.0
    %686 = vmatmul.mubr.f32.gmra.mxu0 %v589
    %v687 = vpop.f32.mrf.mxu0
    %v688 = vadd.f32 0.0, %v687
    %v689 = vpop.f32.mrf.mxu0
    %690 = vmatprep.mubr.f32.mxu0 0.0
    %691 = vmatmul.mubr.f32.gmra.mxu0 %v590
    %v692 = vpop.f32.mrf.mxu0
    %v693 = vadd.f32 0.0, %v692
    %v694 = vpop.f32.mrf.mxu0
    %695 = vmatprep.mubr.f32.mxu0 0.0
    %696 = vmatmul.mubr.f32.gmra.mxu0 %v591
    %v697 = vpop.f32.mrf.mxu0
    %v698 = vadd.f32 0.0, %v697
    %v699 = vpop.f32.mrf.mxu0
    %700 = vmatprep.mubr.f32.mxu0 0.0
    %701 = vmatmul.mubr.f32.gmra.mxu0 %v592
    %v702 = vpop.f32.mrf.mxu0
    %v703 = vadd.f32 0.0, %v702
    %v704 = vpop.f32.mrf.mxu0
    %705 = vmatprep.mubr.f32.mxu0 0.0
    %706 = vmatmul.mubr.f32.gmra.mxu0 %v593
    %v707 = vpop.f32.mrf.mxu0
    %v708 = vadd.f32 0.0, %v707
    %v709 = vpop.f32.mrf.mxu0
    %710 = vmatprep.mubr.f32.mxu0 0.0
    %711 = vmatmul.mubr.f32.gmra.mxu0 %v594
    %v712 = vpop.f32.mrf.mxu0
    %v713 = vadd.f32 0.0, %v712
    %v714 = vpop.f32.mrf.mxu0
    %715 = vmatprep.mubr.f32.mxu0 0.0
    %716 = vmatmul.mubr.f32.gmra.mxu0 %v595
    %v717 = vpop.f32.mrf.mxu0
    %v718 = vadd.f32 0.0, %v717
    %v719 = vpop.f32.mrf.mxu0
    %720 = vmatprep.mubr.f32.mxu0 0.0
    %721 = vmatmul.mubr.f32.gmra.mxu0 %v596
    %v722 = vpop.f32.mrf.mxu0
    %v723 = vadd.f32 0.0, %v722
    %v724 = vpop.f32.mrf.mxu0
    %725 = vmatprep.mubr.f32.mxu0 0.0
    %726 = vmatmul.mubr.f32.gmra.mxu0 %v597
    %v727 = vpop.f32.mrf.mxu0
    %v728 = vadd.f32 0.0, %v727
    %v729 = vpop.f32.mrf.mxu0
    %730 = vmatprep.mubr.f32.mxu0 0.0
    %731 = vmatmul.mubr.f32.gmra.mxu0 %v598
    %v732 = vpop.f32.mrf.mxu0
    %v733 = vadd.f32 0.0, %v732
    %v734 = vpop.f32.mrf.mxu0
    %735 = vmatprep.mubr.f32.mxu0 0.0
    %736 = vmatmul.mubr.f32.gmra.mxu0 %v599
    %v737 = vpop.f32.mrf.mxu0
    %v738 = vadd.f32 0.0, %v737
    %v739 = vpop.f32.mrf.mxu0
    %740 = vmatprep.mubr.f32.mxu0 0.0
    %741 = vmatmul.mubr.f32.gmra.mxu0 %v600
    %v742 = vpop.f32.mrf.mxu0
    %v743 = vadd.f32 0.0, %v742
    %v744 = vpop.f32.mrf.mxu0
    %745 = vmatprep.mubr.f32.mxu0 0.0
    %746 = vmatmul.mubr.f32.gmra.mxu0 %v601
    %v747 = vpop.f32.mrf.mxu0
    %v748 = vadd.f32 0.0, %v747
    %v749 = vpop.f32.mrf.mxu0
    %750 = vmatprep.mubr.f32.mxu0 0.0
    %751 = vmatmul.mubr.f32.gmra.mxu0 %v602
    %v752 = vpop.f32.mrf.mxu0
    %v753 = vadd.f32 0.0, %v752
    %v754 = vpop.f32.mrf.mxu0
    %755 = vmatprep.mubr.f32.mxu0 0.0
    %756 = vmatmul.mubr.f32.gmra.mxu0 %v603
    %v757 = vpop.f32.mrf.mxu0
    %v758 = vadd.f32 0.0, %v757
    %v759 = vpop.f32.mrf.mxu0
    %760 = vmatprep.mubr.f32.mxu0 0.0
    %761 = vmatmul.mubr.f32.gmra.mxu0 %v604
    %v762 = vpop.f32.mrf.mxu0
    %v763 = vadd.f32 0.0, %v762
    %v764 = vpop.f32.mrf.mxu0
    %765 = vdwg.mxu0
    %v766 = vld [vmem:[%s7] sm:$0x1]
    %v767 = vld [vmem:[%s8] sm:$0x1]
    %v768 = vadd.f32 %v688, %v693
    %v769 = vadd.f32 %v768, %v698
    %v770 = vadd.f32 %v769, %v703
    %v771 = vadd.f32 %v770, %v708
    %v772 = vadd.f32 %v771, %v713
    %v773 = vadd.f32 %v772, %v718
    %v774 = vadd.f32 %v773, %v723
    %v775 = vrot.slane %v774, 4
    %v776 = vadd.f32 %v774, %v775
    %v777 = vrot.slane %v776, 2
    %v778 = vadd.f32 %v776, %v777
    %v779 = vrot.slane %v778, 1
    %v780 = vadd.f32 %v778, %v779
    %v781 = vadd.f32 %v728, %v733
    %v782 = vadd.f32 %v781, %v738
    %v783 = vadd.f32 %v782, %v743
    %v784 = vadd.f32 %v783, %v748
    %v785 = vadd.f32 %v784, %v753
    %v786 = vadd.f32 %v785, %v758
    %v787 = vadd.f32 %v786, %v763
    %v788 = vrot.slane %v787, 4
    %v789 = vadd.f32 %v787, %v788
    %v790 = vrot.slane %v789, 2
    %v791 = vadd.f32 %v789, %v790
    %v792 = vrot.slane %v791, 1
    %v793 = vadd.f32 %v791, %v792
    %v794 = vmul.f32 %v780, %v464
    %v795 = vmul.f32 %v793, %v464
    %v796 = vmul.f32 %v688, %v688
    %v797 = vmul.f32 %v693, %v693
    %v798 = vmul.f32 %v698, %v698
    %v799 = vmul.f32 %v703, %v703
    %v800 = vmul.f32 %v708, %v708
    %v801 = vmul.f32 %v713, %v713
    %v802 = vmul.f32 %v718, %v718
    %v803 = vmul.f32 %v723, %v723
    %v804 = vmul.f32 %v728, %v728
    %v805 = vmul.f32 %v733, %v733
    %v806 = vmul.f32 %v738, %v738
    %v807 = vmul.f32 %v743, %v743
    %v808 = vmul.f32 %v748, %v748
    %v809 = vmul.f32 %v753, %v753
    %v810 = vmul.f32 %v758, %v758
    %v811 = vmul.f32 %v763, %v763
    %v812 = vadd.f32 %v796, %v797
    %v813 = vadd.f32 %v812, %v798
    %v814 = vadd.f32 %v813, %v799
    %v815 = vadd.f32 %v814, %v800
    %v816 = vadd.f32 %v815, %v801
    %v817 = vadd.f32 %v816, %v802
    %v818 = vadd.f32 %v817, %v803
    %v819 = vrot.slane %v818, 4
    %v820 = vadd.f32 %v818, %v819
    %v821 = vrot.slane %v820, 2
    %v822 = vadd.f32 %v820, %v821
    %v823 = vrot.slane %v822, 1
    %v824 = vadd.f32 %v822, %v823
    %v825 = vadd.f32 %v804, %v805
    %v826 = vadd.f32 %v825, %v806
    %v827 = vadd.f32 %v826, %v807
    %v828 = vadd.f32 %v827, %v808
    %v829 = vadd.f32 %v828, %v809
    %v830 = vadd.f32 %v829, %v810
    %v831 = vadd.f32 %v830, %v811
    %v832 = vrot.slane %v831, 4
    %v833 = vadd.f32 %v831, %v832
    %v834 = vrot.slane %v833, 2
    %v835 = vadd.f32 %v833, %v834
    %v836 = vrot.slane %v835, 1
    %v837 = vadd.f32 %v835, %v836
    %v838 = vmul.f32 %v824, %v464
    %v839 = vmul.f32 %v837, %v464
    %v840 = vmul.f32 %v794, %v794
    %v841 = vmul.f32 %v795, %v795
    %v842 = vsub.f32 %v838, %v840
    %v843 = vsub.f32 %v839, %v841
    %v844 = vmax.f32 %v842, 0.0
    %v845 = vmax.f32 %v843, 0.0
    %v846 = vadd.f32 %v844, 1e-05
    %v847 = vadd.f32 %v845, 1e-05
    %v848 = vrsqrt.pop %v846
    %v849 = vrsqrt.pop %v847
    %v850 = vmul.f32 %v848, %v848
    %v851 = vmul.f32 %v849, %v849
    %v852 = vmul.f32 %v844, %v850
    %v853 = vmul.f32 %v845, %v851
    %v854 = vadd.f32 %v852, %v853
    %v855 = vmul.f32 %v854, %v526
    %v856 = vadd.f32 %v855, 1e-05
    %v857 = vrsqrt.pop %v856
    %v858 = vmul.f32 %v857, %v766
    %v859 = vmul.f32 %v848, %v858
    %v860 = vmul.f32 %v849, %v858
    %v861 = vmul.f32 %v794, %v859
    %v862 = vmul.f32 %v795, %v860
    %v863 = vsub.f32 %v767, %v861
    %v864 = vsub.f32 %v767, %v862
    %v865 = vlaneseq
    %v866 = vshrl.u32 %v865, 7
    %v867 = vsub.s32 0, %v866
    %v868 = vrot.slane %v859, %v867
    %v869 = vlaneseq
    %v870 = vshrl.u32 %v869, 7
    %v871 = vsub.s32 0, %v870
    %v872 = vrot.slane %v860, %v871
    %v873 = vmul.f32 %v688, %v868
    %v874 = vmul.f32 %v693, %v868
    %v875 = vmul.f32 %v698, %v868
    %v876 = vmul.f32 %v703, %v868
    %v877 = vmul.f32 %v708, %v868
    %v878 = vmul.f32 %v713, %v868
    %v879 = vmul.f32 %v718, %v868
    %v880 = vmul.f32 %v723, %v868
    %v881 = vmul.f32 %v728, %v872
    %v882 = vmul.f32 %v733, %v872
    %v883 = vmul.f32 %v738, %v872
    %v884 = vmul.f32 %v743, %v872
    %v885 = vmul.f32 %v748, %v872
    %v886 = vmul.f32 %v753, %v872
    %v887 = vmul.f32 %v758, %v872
    %v888 = vmul.f32 %v763, %v872
    %v891 = vlaneseq
    %v892 = vshrl.u32 %v891, 7
    %v893 = vsub.s32 0, %v892
    %v894 = vrot.slane %v863, %v893
    %v895 = vlaneseq
    %v896 = vshrl.u32 %v895, 7
    %v897 = vsub.s32 0, %v896
    %v898 = vrot.slane %v864, %v897
    %v901 = vadd.f32 %v873, %v894
    %v902 = vadd.f32 %v874, %v894
    %v903 = vadd.f32 %v875, %v894
    %v904 = vadd.f32 %v876, %v894
    %v905 = vadd.f32 %v877, %v894
    %v906 = vadd.f32 %v878, %v894
    %v907 = vadd.f32 %v879, %v894
    %v908 = vadd.f32 %v880, %v894
    %v909 = vadd.f32 %v881, %v898
    %v910 = vadd.f32 %v882, %v898
    %v911 = vadd.f32 %v883, %v898
    %v912 = vadd.f32 %v884, %v898
    %v913 = vadd.f32 %v885, %v898
    %v914 = vadd.f32 %v886, %v898
    %v915 = vadd.f32 %v887, %v898
    %v916 = vadd.f32 %v888, %v898
    %v917 = vmax.f32 %v901, 0.0
    %v918 = vmax.f32 %v902, 0.0
    %v919 = vmax.f32 %v903, 0.0
    %v920 = vmax.f32 %v904, 0.0
    %v921 = vmax.f32 %v905, 0.0
    %v922 = vmax.f32 %v906, 0.0
    %v923 = vmax.f32 %v907, 0.0
    %v924 = vmax.f32 %v908, 0.0
    %v925 = vmax.f32 %v909, 0.0
    %v926 = vmax.f32 %v910, 0.0
    %v927 = vmax.f32 %v911, 0.0
    %v928 = vmax.f32 %v912, 0.0
    %v929 = vmax.f32 %v913, 0.0
    %v930 = vmax.f32 %v914, 0.0
    %v931 = vmax.f32 %v915, 0.0
    %v932 = vmax.f32 %v916, 0.0
    %v933 = vadd.f32 %v917, %v259
    %v934 = vadd.f32 %v918, %v260
    %v935 = vadd.f32 %v919, %v261
    %v936 = vadd.f32 %v920, %v262
    %v937 = vadd.f32 %v921, %v263
    %v938 = vadd.f32 %v922, %v264
    %v939 = vadd.f32 %v923, %v265
    %v940 = vadd.f32 %v924, %v266
    %v941 = vadd.f32 %v925, %v267
    %v942 = vadd.f32 %v926, %v268
    %v943 = vadd.f32 %v927, %v269
    %v944 = vadd.f32 %v928, %v270
    %v945 = vadd.f32 %v929, %v271
    %v946 = vadd.f32 %v930, %v272
    %v947 = vadd.f32 %v931, %v273
    %v948 = vadd.f32 %v932, %v274
    %s949 = scalar_lea.vmem %s3, 128
    %v950 = vld [vmem:[%s949] sm:$0xff]
    %v951 = vld [vmem:[%s949 + $0x8] sm:$0xff]
    %v952 = vld [vmem:[%s949 + $0x10] sm:$0xff]
    %v953 = vld [vmem:[%s949 + $0x18] sm:$0xff]
    %v954 = vld [vmem:[%s949 + $0x20] sm:$0xff]
    %v955 = vld [vmem:[%s949 + $0x28] sm:$0xff]
    %v956 = vld [vmem:[%s949 + $0x30] sm:$0xff]
    %v957 = vld [vmem:[%s949 + $0x38] sm:$0xff]
    %v958 = vld [vmem:[%s949 + $0x40] sm:$0xff]
    %v959 = vld [vmem:[%s949 + $0x48] sm:$0xff]
    %v960 = vld [vmem:[%s949 + $0x50] sm:$0xff]
    %v961 = vld [vmem:[%s949 + $0x58] sm:$0xff]
    %v962 = vld [vmem:[%s949 + $0x60] sm:$0xff]
    %v963 = vld [vmem:[%s949 + $0x68] sm:$0xff]
    %v964 = vld [vmem:[%s949 + $0x70] sm:$0xff]
    %v965 = vld [vmem:[%s949 + $0x78] sm:$0xff]
    %966 = vmatprep.subr.mxu0 0.0
    %967 = vmatpush1.msra.mxu0 %v965
    %968 = vmatprep.subr.mxu0 0.0
    %969 = vmatpush1.msra.mxu0 %v964
    %970 = vmatprep.subr.mxu0 0.0
    %971 = vmatpush1.msra.mxu0 %v963
    %972 = vmatprep.subr.mxu0 0.0
    %973 = vmatpush1.msra.mxu0 %v962
    %974 = vmatprep.subr.mxu0 0.0
    %975 = vmatpush1.msra.mxu0 %v961
    %976 = vmatprep.subr.mxu0 0.0
    %977 = vmatpush1.msra.mxu0 %v960
    %978 = vmatprep.subr.mxu0 0.0
    %979 = vmatpush1.msra.mxu0 %v959
    %980 = vmatprep.subr.mxu0 0.0
    %981 = vmatpush1.msra.mxu0 %v958
    %982 = vmatprep.subr.mxu0 0.0
    %983 = vmatpush1.msra.mxu0 %v957
    %984 = vmatprep.subr.mxu0 0.0
    %985 = vmatpush1.msra.mxu0 %v956
    %986 = vmatprep.subr.mxu0 0.0
    %987 = vmatpush1.msra.mxu0 %v955
    %988 = vmatprep.subr.mxu0 0.0
    %989 = vmatpush1.msra.mxu0 %v954
    %990 = vmatprep.subr.mxu0 0.0
    %991 = vmatpush1.msra.mxu0 %v953
    %992 = vmatprep.subr.mxu0 0.0
    %993 = vmatpush1.msra.mxu0 %v952
    %994 = vmatprep.subr.mxu0 0.0
    %995 = vmatpush1.msra.mxu0 %v951
    %996 = vmatprep.subr.mxu0 0.0
    %997 = vmatpush1.msra.mxu0 %v950
    %998 = vmatprep.subr.mxu0 0.0
    %999 = vmatpush2.msra.mxu0 0.0
    %1000 = vmatprep.subr.mxu0 0.0
    %1001 = vmatpush2.msra.mxu0 0.0
    %1002 = vmatprep.subr.mxu0 0.0
    %1003 = vmatpush2.msra.mxu0 0.0
    %1004 = vmatprep.subr.mxu0 0.0
    %1005 = vmatpush2.msra.mxu0 0.0
    %1006 = vmatprep.subr.mxu0 0.0
    %1007 = vmatpush2.msra.mxu0 0.0
    %1008 = vmatprep.subr.mxu0 0.0
    %1009 = vmatpush2.msra.mxu0 0.0
    %1010 = vmatprep.subr.mxu0 0.0
    %1011 = vmatpush2.msra.mxu0 0.0
    %1012 = vmatprep.subr.mxu0 0.0
    %1013 = vmatpush2.msra.mxu0 0.0
    %1014 = vmatprep.subr.mxu0 0.0
    %1015 = vmatpush2.msra.mxu0 0.0
    %1016 = vmatprep.subr.mxu0 0.0
    %1017 = vmatpush2.msra.mxu0 0.0
    %1018 = vmatprep.subr.mxu0 0.0
    %1019 = vmatpush2.msra.mxu0 0.0
    %1020 = vmatprep.subr.mxu0 0.0
    %1021 = vmatpush2.msra.mxu0 0.0
    %1022 = vmatprep.subr.mxu0 0.0
    %1023 = vmatpush2.msra.mxu0 0.0
    %1024 = vmatprep.subr.mxu0 0.0
    %1025 = vmatpush2.msra.mxu0 0.0
    %1026 = vmatprep.subr.mxu0 0.0
    %1027 = vmatpush2.msra.mxu0 0.0
    %1028 = vmatprep.subr.mxu0 0.0
    %1029 = vmatpush2.msra.mxu0 0.0
    %1030 = vmatprep.mubr.f32.mxu0 0.0
    %1031 = vmatmul.mubr.f32.gmra.mxu0 %v933
    %v1032 = vpop.f32.mrf.mxu0
    %v1033 = vadd.f32 0.0, %v1032
    %v1034 = vpop.f32.mrf.mxu0
    %1035 = vmatprep.mubr.f32.mxu0 0.0
    %1036 = vmatmul.mubr.f32.gmra.mxu0 %v934
    %v1037 = vpop.f32.mrf.mxu0
    %v1038 = vadd.f32 0.0, %v1037
    %v1039 = vpop.f32.mrf.mxu0
    %1040 = vmatprep.mubr.f32.mxu0 0.0
    %1041 = vmatmul.mubr.f32.gmra.mxu0 %v935
    %v1042 = vpop.f32.mrf.mxu0
    %v1043 = vadd.f32 0.0, %v1042
    %v1044 = vpop.f32.mrf.mxu0
    %1045 = vmatprep.mubr.f32.mxu0 0.0
    %1046 = vmatmul.mubr.f32.gmra.mxu0 %v936
    %v1047 = vpop.f32.mrf.mxu0
    %v1048 = vadd.f32 0.0, %v1047
    %v1049 = vpop.f32.mrf.mxu0
    %1050 = vmatprep.mubr.f32.mxu0 0.0
    %1051 = vmatmul.mubr.f32.gmra.mxu0 %v937
    %v1052 = vpop.f32.mrf.mxu0
    %v1053 = vadd.f32 0.0, %v1052
    %v1054 = vpop.f32.mrf.mxu0
    %1055 = vmatprep.mubr.f32.mxu0 0.0
    %1056 = vmatmul.mubr.f32.gmra.mxu0 %v938
    %v1057 = vpop.f32.mrf.mxu0
    %v1058 = vadd.f32 0.0, %v1057
    %v1059 = vpop.f32.mrf.mxu0
    %1060 = vmatprep.mubr.f32.mxu0 0.0
    %1061 = vmatmul.mubr.f32.gmra.mxu0 %v939
    %v1062 = vpop.f32.mrf.mxu0
    %v1063 = vadd.f32 0.0, %v1062
    %v1064 = vpop.f32.mrf.mxu0
    %1065 = vmatprep.mubr.f32.mxu0 0.0
    %1066 = vmatmul.mubr.f32.gmra.mxu0 %v940
    %v1067 = vpop.f32.mrf.mxu0
    %v1068 = vadd.f32 0.0, %v1067
    %v1069 = vpop.f32.mrf.mxu0
    %1070 = vmatprep.mubr.f32.mxu0 0.0
    %1071 = vmatmul.mubr.f32.gmra.mxu0 %v941
    %v1072 = vpop.f32.mrf.mxu0
    %v1073 = vadd.f32 0.0, %v1072
    %v1074 = vpop.f32.mrf.mxu0
    %1075 = vmatprep.mubr.f32.mxu0 0.0
    %1076 = vmatmul.mubr.f32.gmra.mxu0 %v942
    %v1077 = vpop.f32.mrf.mxu0
    %v1078 = vadd.f32 0.0, %v1077
    %v1079 = vpop.f32.mrf.mxu0
    %1080 = vmatprep.mubr.f32.mxu0 0.0
    %1081 = vmatmul.mubr.f32.gmra.mxu0 %v943
    %v1082 = vpop.f32.mrf.mxu0
    %v1083 = vadd.f32 0.0, %v1082
    %v1084 = vpop.f32.mrf.mxu0
    %1085 = vmatprep.mubr.f32.mxu0 0.0
    %1086 = vmatmul.mubr.f32.gmra.mxu0 %v944
    %v1087 = vpop.f32.mrf.mxu0
    %v1088 = vadd.f32 0.0, %v1087
    %v1089 = vpop.f32.mrf.mxu0
    %1090 = vmatprep.mubr.f32.mxu0 0.0
    %1091 = vmatmul.mubr.f32.gmra.mxu0 %v945
    %v1092 = vpop.f32.mrf.mxu0
    %v1093 = vadd.f32 0.0, %v1092
    %v1094 = vpop.f32.mrf.mxu0
    %1095 = vmatprep.mubr.f32.mxu0 0.0
    %1096 = vmatmul.mubr.f32.gmra.mxu0 %v946
    %v1097 = vpop.f32.mrf.mxu0
    %v1098 = vadd.f32 0.0, %v1097
    %v1099 = vpop.f32.mrf.mxu0
    %1100 = vmatprep.mubr.f32.mxu0 0.0
    %1101 = vmatmul.mubr.f32.gmra.mxu0 %v947
    %v1102 = vpop.f32.mrf.mxu0
    %v1103 = vadd.f32 0.0, %v1102
    %v1104 = vpop.f32.mrf.mxu0
    %1105 = vmatprep.mubr.f32.mxu0 0.0
    %1106 = vmatmul.mubr.f32.gmra.mxu0 %v948
    %v1107 = vpop.f32.mrf.mxu0
    %v1108 = vadd.f32 0.0, %v1107
    %v1109 = vpop.f32.mrf.mxu0
    %1110 = vdwg.mxu0
    %s1111 = scalar_lea.vmem %s4, 1
    %v1112 = vld [vmem:[%s1111] sm:$0x1]
    %s1113 = scalar_lea.vmem %s5, 1
    %v1114 = vld [vmem:[%s1113] sm:$0x1]
    %v1115 = vadd.f32 %v1033, %v1038
    %v1116 = vadd.f32 %v1115, %v1043
    %v1117 = vadd.f32 %v1116, %v1048
    %v1118 = vadd.f32 %v1117, %v1053
    %v1119 = vadd.f32 %v1118, %v1058
    %v1120 = vadd.f32 %v1119, %v1063
    %v1121 = vadd.f32 %v1120, %v1068
    %v1122 = vrot.slane %v1121, 4
    %v1123 = vadd.f32 %v1121, %v1122
    %v1124 = vrot.slane %v1123, 2
    %v1125 = vadd.f32 %v1123, %v1124
    %v1126 = vrot.slane %v1125, 1
    %v1127 = vadd.f32 %v1125, %v1126
    %v1128 = vadd.f32 %v1073, %v1078
    %v1129 = vadd.f32 %v1128, %v1083
    %v1130 = vadd.f32 %v1129, %v1088
    %v1131 = vadd.f32 %v1130, %v1093
    %v1132 = vadd.f32 %v1131, %v1098
    %v1133 = vadd.f32 %v1132, %v1103
    %v1134 = vadd.f32 %v1133, %v1108
    %v1135 = vrot.slane %v1134, 4
    %v1136 = vadd.f32 %v1134, %v1135
    %v1137 = vrot.slane %v1136, 2
    %v1138 = vadd.f32 %v1136, %v1137
    %v1139 = vrot.slane %v1138, 1
    %v1140 = vadd.f32 %v1138, %v1139
    %v1141 = vmul.f32 %v1127, %v464
    %v1142 = vmul.f32 %v1140, %v464
    %v1143 = vmul.f32 %v1033, %v1033
    %v1144 = vmul.f32 %v1038, %v1038
    %v1145 = vmul.f32 %v1043, %v1043
    %v1146 = vmul.f32 %v1048, %v1048
    %v1147 = vmul.f32 %v1053, %v1053
    %v1148 = vmul.f32 %v1058, %v1058
    %v1149 = vmul.f32 %v1063, %v1063
    %v1150 = vmul.f32 %v1068, %v1068
    %v1151 = vmul.f32 %v1073, %v1073
    %v1152 = vmul.f32 %v1078, %v1078
    %v1153 = vmul.f32 %v1083, %v1083
    %v1154 = vmul.f32 %v1088, %v1088
    %v1155 = vmul.f32 %v1093, %v1093
    %v1156 = vmul.f32 %v1098, %v1098
    %v1157 = vmul.f32 %v1103, %v1103
    %v1158 = vmul.f32 %v1108, %v1108
    %v1159 = vadd.f32 %v1143, %v1144
    %v1160 = vadd.f32 %v1159, %v1145
    %v1161 = vadd.f32 %v1160, %v1146
    %v1162 = vadd.f32 %v1161, %v1147
    %v1163 = vadd.f32 %v1162, %v1148
    %v1164 = vadd.f32 %v1163, %v1149
    %v1165 = vadd.f32 %v1164, %v1150
    %v1166 = vrot.slane %v1165, 4
    %v1167 = vadd.f32 %v1165, %v1166
    %v1168 = vrot.slane %v1167, 2
    %v1169 = vadd.f32 %v1167, %v1168
    %v1170 = vrot.slane %v1169, 1
    %v1171 = vadd.f32 %v1169, %v1170
    %v1172 = vadd.f32 %v1151, %v1152
    %v1173 = vadd.f32 %v1172, %v1153
    %v1174 = vadd.f32 %v1173, %v1154
    %v1175 = vadd.f32 %v1174, %v1155
    %v1176 = vadd.f32 %v1175, %v1156
    %v1177 = vadd.f32 %v1176, %v1157
    %v1178 = vadd.f32 %v1177, %v1158
    %v1179 = vrot.slane %v1178, 4
    %v1180 = vadd.f32 %v1178, %v1179
    %v1181 = vrot.slane %v1180, 2
    %v1182 = vadd.f32 %v1180, %v1181
    %v1183 = vrot.slane %v1182, 1
    %v1184 = vadd.f32 %v1182, %v1183
    %v1185 = vmul.f32 %v1171, %v464
    %v1186 = vmul.f32 %v1184, %v464
    %v1187 = vmul.f32 %v1141, %v1141
    %v1188 = vmul.f32 %v1142, %v1142
    %v1189 = vsub.f32 %v1185, %v1187
    %v1190 = vsub.f32 %v1186, %v1188
    %v1191 = vmax.f32 %v1189, 0.0
    %v1192 = vmax.f32 %v1190, 0.0
    %v1193 = vadd.f32 %v1191, 1e-05
    %v1194 = vadd.f32 %v1192, 1e-05
    %v1195 = vrsqrt.pop %v1193
    %v1196 = vrsqrt.pop %v1194
    %v1197 = vmul.f32 %v1195, %v1195
    %v1198 = vmul.f32 %v1196, %v1196
    %v1199 = vmul.f32 %v1191, %v1197
    %v1200 = vmul.f32 %v1192, %v1198
    %v1201 = vadd.f32 %v1199, %v1200
    %v1202 = vmul.f32 %v1201, %v526
    %v1203 = vadd.f32 %v1202, 1e-05
    %v1204 = vrsqrt.pop %v1203
    %v1205 = vmul.f32 %v1204, %v1112
    %v1206 = vmul.f32 %v1195, %v1205
    %v1207 = vmul.f32 %v1196, %v1205
    %v1208 = vmul.f32 %v1141, %v1206
    %v1209 = vmul.f32 %v1142, %v1207
    %v1210 = vsub.f32 %v1114, %v1208
    %v1211 = vsub.f32 %v1114, %v1209
    %v1212 = vlaneseq
    %v1213 = vshrl.u32 %v1212, 7
    %v1214 = vsub.s32 0, %v1213
    %v1215 = vrot.slane %v1206, %v1214
    %v1216 = vlaneseq
    %v1217 = vshrl.u32 %v1216, 7
    %v1218 = vsub.s32 0, %v1217
    %v1219 = vrot.slane %v1207, %v1218
    %v1220 = vmul.f32 %v1033, %v1215
    %v1221 = vmul.f32 %v1038, %v1215
    %v1222 = vmul.f32 %v1043, %v1215
    %v1223 = vmul.f32 %v1048, %v1215
    %v1224 = vmul.f32 %v1053, %v1215
    %v1225 = vmul.f32 %v1058, %v1215
    %v1226 = vmul.f32 %v1063, %v1215
    %v1227 = vmul.f32 %v1068, %v1215
    %v1228 = vmul.f32 %v1073, %v1219
    %v1229 = vmul.f32 %v1078, %v1219
    %v1230 = vmul.f32 %v1083, %v1219
    %v1231 = vmul.f32 %v1088, %v1219
    %v1232 = vmul.f32 %v1093, %v1219
    %v1233 = vmul.f32 %v1098, %v1219
    %v1234 = vmul.f32 %v1103, %v1219
    %v1235 = vmul.f32 %v1108, %v1219
    %v1238 = vlaneseq
    %v1239 = vshrl.u32 %v1238, 7
    %v1240 = vsub.s32 0, %v1239
    %v1241 = vrot.slane %v1210, %v1240
    %v1242 = vlaneseq
    %v1243 = vshrl.u32 %v1242, 7
    %v1244 = vsub.s32 0, %v1243
    %v1245 = vrot.slane %v1211, %v1244
    %v1248 = vadd.f32 %v1220, %v1241
    %v1249 = vadd.f32 %v1221, %v1241
    %v1250 = vadd.f32 %v1222, %v1241
    %v1251 = vadd.f32 %v1223, %v1241
    %v1252 = vadd.f32 %v1224, %v1241
    %v1253 = vadd.f32 %v1225, %v1241
    %v1254 = vadd.f32 %v1226, %v1241
    %v1255 = vadd.f32 %v1227, %v1241
    %v1256 = vadd.f32 %v1228, %v1245
    %v1257 = vadd.f32 %v1229, %v1245
    %v1258 = vadd.f32 %v1230, %v1245
    %v1259 = vadd.f32 %v1231, %v1245
    %v1260 = vadd.f32 %v1232, %v1245
    %v1261 = vadd.f32 %v1233, %v1245
    %v1262 = vadd.f32 %v1234, %v1245
    %v1263 = vadd.f32 %v1235, %v1245
    %v1264 = vmax.f32 %v1248, 0.0
    %v1265 = vmax.f32 %v1249, 0.0
    %v1266 = vmax.f32 %v1250, 0.0
    %v1267 = vmax.f32 %v1251, 0.0
    %v1268 = vmax.f32 %v1252, 0.0
    %v1269 = vmax.f32 %v1253, 0.0
    %v1270 = vmax.f32 %v1254, 0.0
    %v1271 = vmax.f32 %v1255, 0.0
    %v1272 = vmax.f32 %v1256, 0.0
    %v1273 = vmax.f32 %v1257, 0.0
    %v1274 = vmax.f32 %v1258, 0.0
    %v1275 = vmax.f32 %v1259, 0.0
    %v1276 = vmax.f32 %v1260, 0.0
    %v1277 = vmax.f32 %v1261, 0.0
    %v1278 = vmax.f32 %v1262, 0.0
    %v1279 = vmax.f32 %v1263, 0.0
    %s1280 = scalar_lea.vmem %s6, 128
    %v1281 = vld [vmem:[%s1280] sm:$0xff]
    %v1282 = vld [vmem:[%s1280 + $0x8] sm:$0xff]
    %v1283 = vld [vmem:[%s1280 + $0x10] sm:$0xff]
    %v1284 = vld [vmem:[%s1280 + $0x18] sm:$0xff]
    %v1285 = vld [vmem:[%s1280 + $0x20] sm:$0xff]
    %v1286 = vld [vmem:[%s1280 + $0x28] sm:$0xff]
    %v1287 = vld [vmem:[%s1280 + $0x30] sm:$0xff]
    %v1288 = vld [vmem:[%s1280 + $0x38] sm:$0xff]
    %v1289 = vld [vmem:[%s1280 + $0x40] sm:$0xff]
    %v1290 = vld [vmem:[%s1280 + $0x48] sm:$0xff]
    %v1291 = vld [vmem:[%s1280 + $0x50] sm:$0xff]
    %v1292 = vld [vmem:[%s1280 + $0x58] sm:$0xff]
    %v1293 = vld [vmem:[%s1280 + $0x60] sm:$0xff]
    %v1294 = vld [vmem:[%s1280 + $0x68] sm:$0xff]
    %v1295 = vld [vmem:[%s1280 + $0x70] sm:$0xff]
    %v1296 = vld [vmem:[%s1280 + $0x78] sm:$0xff]
    %1297 = vmatprep.subr.mxu0 0.0
    %1298 = vmatpush1.msra.mxu0 %v1296
    %1299 = vmatprep.subr.mxu0 0.0
    %1300 = vmatpush1.msra.mxu0 %v1295
    %1301 = vmatprep.subr.mxu0 0.0
    %1302 = vmatpush1.msra.mxu0 %v1294
    %1303 = vmatprep.subr.mxu0 0.0
    %1304 = vmatpush1.msra.mxu0 %v1293
    %1305 = vmatprep.subr.mxu0 0.0
    %1306 = vmatpush1.msra.mxu0 %v1292
    %1307 = vmatprep.subr.mxu0 0.0
    %1308 = vmatpush1.msra.mxu0 %v1291
    %1309 = vmatprep.subr.mxu0 0.0
    %1310 = vmatpush1.msra.mxu0 %v1290
    %1311 = vmatprep.subr.mxu0 0.0
    %1312 = vmatpush1.msra.mxu0 %v1289
    %1313 = vmatprep.subr.mxu0 0.0
    %1314 = vmatpush1.msra.mxu0 %v1288
    %1315 = vmatprep.subr.mxu0 0.0
    %1316 = vmatpush1.msra.mxu0 %v1287
    %1317 = vmatprep.subr.mxu0 0.0
    %1318 = vmatpush1.msra.mxu0 %v1286
    %1319 = vmatprep.subr.mxu0 0.0
    %1320 = vmatpush1.msra.mxu0 %v1285
    %1321 = vmatprep.subr.mxu0 0.0
    %1322 = vmatpush1.msra.mxu0 %v1284
    %1323 = vmatprep.subr.mxu0 0.0
    %1324 = vmatpush1.msra.mxu0 %v1283
    %1325 = vmatprep.subr.mxu0 0.0
    %1326 = vmatpush1.msra.mxu0 %v1282
    %1327 = vmatprep.subr.mxu0 0.0
    %1328 = vmatpush1.msra.mxu0 %v1281
    %1329 = vmatprep.subr.mxu0 0.0
    %1330 = vmatpush2.msra.mxu0 0.0
    %1331 = vmatprep.subr.mxu0 0.0
    %1332 = vmatpush2.msra.mxu0 0.0
    %1333 = vmatprep.subr.mxu0 0.0
    %1334 = vmatpush2.msra.mxu0 0.0
    %1335 = vmatprep.subr.mxu0 0.0
    %1336 = vmatpush2.msra.mxu0 0.0
    %1337 = vmatprep.subr.mxu0 0.0
    %1338 = vmatpush2.msra.mxu0 0.0
    %1339 = vmatprep.subr.mxu0 0.0
    %1340 = vmatpush2.msra.mxu0 0.0
    %1341 = vmatprep.subr.mxu0 0.0
    %1342 = vmatpush2.msra.mxu0 0.0
    %1343 = vmatprep.subr.mxu0 0.0
    %1344 = vmatpush2.msra.mxu0 0.0
    %1345 = vmatprep.subr.mxu0 0.0
    %1346 = vmatpush2.msra.mxu0 0.0
    %1347 = vmatprep.subr.mxu0 0.0
    %1348 = vmatpush2.msra.mxu0 0.0
    %1349 = vmatprep.subr.mxu0 0.0
    %1350 = vmatpush2.msra.mxu0 0.0
    %1351 = vmatprep.subr.mxu0 0.0
    %1352 = vmatpush2.msra.mxu0 0.0
    %1353 = vmatprep.subr.mxu0 0.0
    %1354 = vmatpush2.msra.mxu0 0.0
    %1355 = vmatprep.subr.mxu0 0.0
    %1356 = vmatpush2.msra.mxu0 0.0
    %1357 = vmatprep.subr.mxu0 0.0
    %1358 = vmatpush2.msra.mxu0 0.0
    %1359 = vmatprep.subr.mxu0 0.0
    %1360 = vmatpush2.msra.mxu0 0.0
    %1361 = vmatprep.mubr.f32.mxu0 0.0
    %1362 = vmatmul.mubr.f32.gmra.mxu0 %v1264
    %v1363 = vpop.f32.mrf.mxu0
    %v1364 = vadd.f32 0.0, %v1363
    %v1365 = vpop.f32.mrf.mxu0
    %1366 = vmatprep.mubr.f32.mxu0 0.0
    %1367 = vmatmul.mubr.f32.gmra.mxu0 %v1265
    %v1368 = vpop.f32.mrf.mxu0
    %v1369 = vadd.f32 0.0, %v1368
    %v1370 = vpop.f32.mrf.mxu0
    %1371 = vmatprep.mubr.f32.mxu0 0.0
    %1372 = vmatmul.mubr.f32.gmra.mxu0 %v1266
    %v1373 = vpop.f32.mrf.mxu0
    %v1374 = vadd.f32 0.0, %v1373
    %v1375 = vpop.f32.mrf.mxu0
    %1376 = vmatprep.mubr.f32.mxu0 0.0
    %1377 = vmatmul.mubr.f32.gmra.mxu0 %v1267
    %v1378 = vpop.f32.mrf.mxu0
    %v1379 = vadd.f32 0.0, %v1378
    %v1380 = vpop.f32.mrf.mxu0
    %1381 = vmatprep.mubr.f32.mxu0 0.0
    %1382 = vmatmul.mubr.f32.gmra.mxu0 %v1268
    %v1383 = vpop.f32.mrf.mxu0
    %v1384 = vadd.f32 0.0, %v1383
    %v1385 = vpop.f32.mrf.mxu0
    %1386 = vmatprep.mubr.f32.mxu0 0.0
    %1387 = vmatmul.mubr.f32.gmra.mxu0 %v1269
    %v1388 = vpop.f32.mrf.mxu0
    %v1389 = vadd.f32 0.0, %v1388
    %v1390 = vpop.f32.mrf.mxu0
    %1391 = vmatprep.mubr.f32.mxu0 0.0
    %1392 = vmatmul.mubr.f32.gmra.mxu0 %v1270
    %v1393 = vpop.f32.mrf.mxu0
    %v1394 = vadd.f32 0.0, %v1393
    %v1395 = vpop.f32.mrf.mxu0
    %1396 = vmatprep.mubr.f32.mxu0 0.0
    %1397 = vmatmul.mubr.f32.gmra.mxu0 %v1271
    %v1398 = vpop.f32.mrf.mxu0
    %v1399 = vadd.f32 0.0, %v1398
    %v1400 = vpop.f32.mrf.mxu0
    %1401 = vmatprep.mubr.f32.mxu0 0.0
    %1402 = vmatmul.mubr.f32.gmra.mxu0 %v1272
    %v1403 = vpop.f32.mrf.mxu0
    %v1404 = vadd.f32 0.0, %v1403
    %v1405 = vpop.f32.mrf.mxu0
    %1406 = vmatprep.mubr.f32.mxu0 0.0
    %1407 = vmatmul.mubr.f32.gmra.mxu0 %v1273
    %v1408 = vpop.f32.mrf.mxu0
    %v1409 = vadd.f32 0.0, %v1408
    %v1410 = vpop.f32.mrf.mxu0
    %1411 = vmatprep.mubr.f32.mxu0 0.0
    %1412 = vmatmul.mubr.f32.gmra.mxu0 %v1274
    %v1413 = vpop.f32.mrf.mxu0
    %v1414 = vadd.f32 0.0, %v1413
    %v1415 = vpop.f32.mrf.mxu0
    %1416 = vmatprep.mubr.f32.mxu0 0.0
    %1417 = vmatmul.mubr.f32.gmra.mxu0 %v1275
    %v1418 = vpop.f32.mrf.mxu0
    %v1419 = vadd.f32 0.0, %v1418
    %v1420 = vpop.f32.mrf.mxu0
    %1421 = vmatprep.mubr.f32.mxu0 0.0
    %1422 = vmatmul.mubr.f32.gmra.mxu0 %v1276
    %v1423 = vpop.f32.mrf.mxu0
    %v1424 = vadd.f32 0.0, %v1423
    %v1425 = vpop.f32.mrf.mxu0
    %1426 = vmatprep.mubr.f32.mxu0 0.0
    %1427 = vmatmul.mubr.f32.gmra.mxu0 %v1277
    %v1428 = vpop.f32.mrf.mxu0
    %v1429 = vadd.f32 0.0, %v1428
    %v1430 = vpop.f32.mrf.mxu0
    %1431 = vmatprep.mubr.f32.mxu0 0.0
    %1432 = vmatmul.mubr.f32.gmra.mxu0 %v1278
    %v1433 = vpop.f32.mrf.mxu0
    %v1434 = vadd.f32 0.0, %v1433
    %v1435 = vpop.f32.mrf.mxu0
    %1436 = vmatprep.mubr.f32.mxu0 0.0
    %1437 = vmatmul.mubr.f32.gmra.mxu0 %v1279
    %v1438 = vpop.f32.mrf.mxu0
    %v1439 = vadd.f32 0.0, %v1438
    %v1440 = vpop.f32.mrf.mxu0
    %1441 = vdwg.mxu0
    %s1442 = scalar_lea.vmem %s7, 1
    %v1443 = vld [vmem:[%s1442] sm:$0x1]
    %s1444 = scalar_lea.vmem %s8, 1
    %v1445 = vld [vmem:[%s1444] sm:$0x1]
    %v1446 = vadd.f32 %v1364, %v1369
    %v1447 = vadd.f32 %v1446, %v1374
    %v1448 = vadd.f32 %v1447, %v1379
    %v1449 = vadd.f32 %v1448, %v1384
    %v1450 = vadd.f32 %v1449, %v1389
    %v1451 = vadd.f32 %v1450, %v1394
    %v1452 = vadd.f32 %v1451, %v1399
    %v1453 = vrot.slane %v1452, 4
    %v1454 = vadd.f32 %v1452, %v1453
    %v1455 = vrot.slane %v1454, 2
    %v1456 = vadd.f32 %v1454, %v1455
    %v1457 = vrot.slane %v1456, 1
    %v1458 = vadd.f32 %v1456, %v1457
    %v1459 = vadd.f32 %v1404, %v1409
    %v1460 = vadd.f32 %v1459, %v1414
    %v1461 = vadd.f32 %v1460, %v1419
    %v1462 = vadd.f32 %v1461, %v1424
    %v1463 = vadd.f32 %v1462, %v1429
    %v1464 = vadd.f32 %v1463, %v1434
    %v1465 = vadd.f32 %v1464, %v1439
    %v1466 = vrot.slane %v1465, 4
    %v1467 = vadd.f32 %v1465, %v1466
    %v1468 = vrot.slane %v1467, 2
    %v1469 = vadd.f32 %v1467, %v1468
    %v1470 = vrot.slane %v1469, 1
    %v1471 = vadd.f32 %v1469, %v1470
    %v1472 = vmul.f32 %v1458, %v464
    %v1473 = vmul.f32 %v1471, %v464
    %v1474 = vmul.f32 %v1364, %v1364
    %v1475 = vmul.f32 %v1369, %v1369
    %v1476 = vmul.f32 %v1374, %v1374
    %v1477 = vmul.f32 %v1379, %v1379
    %v1478 = vmul.f32 %v1384, %v1384
    %v1479 = vmul.f32 %v1389, %v1389
    %v1480 = vmul.f32 %v1394, %v1394
    %v1481 = vmul.f32 %v1399, %v1399
    %v1482 = vmul.f32 %v1404, %v1404
    %v1483 = vmul.f32 %v1409, %v1409
    %v1484 = vmul.f32 %v1414, %v1414
    %v1485 = vmul.f32 %v1419, %v1419
    %v1486 = vmul.f32 %v1424, %v1424
    %v1487 = vmul.f32 %v1429, %v1429
    %v1488 = vmul.f32 %v1434, %v1434
    %v1489 = vmul.f32 %v1439, %v1439
    %v1490 = vadd.f32 %v1474, %v1475
    %v1491 = vadd.f32 %v1490, %v1476
    %v1492 = vadd.f32 %v1491, %v1477
    %v1493 = vadd.f32 %v1492, %v1478
    %v1494 = vadd.f32 %v1493, %v1479
    %v1495 = vadd.f32 %v1494, %v1480
    %v1496 = vadd.f32 %v1495, %v1481
    %v1497 = vrot.slane %v1496, 4
    %v1498 = vadd.f32 %v1496, %v1497
    %v1499 = vrot.slane %v1498, 2
    %v1500 = vadd.f32 %v1498, %v1499
    %v1501 = vrot.slane %v1500, 1
    %v1502 = vadd.f32 %v1500, %v1501
    %v1503 = vadd.f32 %v1482, %v1483
    %v1504 = vadd.f32 %v1503, %v1484
    %v1505 = vadd.f32 %v1504, %v1485
    %v1506 = vadd.f32 %v1505, %v1486
    %v1507 = vadd.f32 %v1506, %v1487
    %v1508 = vadd.f32 %v1507, %v1488
    %v1509 = vadd.f32 %v1508, %v1489
    %v1510 = vrot.slane %v1509, 4
    %v1511 = vadd.f32 %v1509, %v1510
    %v1512 = vrot.slane %v1511, 2
    %v1513 = vadd.f32 %v1511, %v1512
    %v1514 = vrot.slane %v1513, 1
    %v1515 = vadd.f32 %v1513, %v1514
    %v1516 = vmul.f32 %v1502, %v464
    %v1517 = vmul.f32 %v1515, %v464
    %v1518 = vmul.f32 %v1472, %v1472
    %v1519 = vmul.f32 %v1473, %v1473
    %v1520 = vsub.f32 %v1516, %v1518
    %v1521 = vsub.f32 %v1517, %v1519
    %v1522 = vmax.f32 %v1520, 0.0
    %v1523 = vmax.f32 %v1521, 0.0
    %v1524 = vadd.f32 %v1522, 1e-05
    %v1525 = vadd.f32 %v1523, 1e-05
    %v1526 = vrsqrt.pop %v1524
    %v1527 = vrsqrt.pop %v1525
    %v1528 = vmul.f32 %v1526, %v1526
    %v1529 = vmul.f32 %v1527, %v1527
    %v1530 = vmul.f32 %v1522, %v1528
    %v1531 = vmul.f32 %v1523, %v1529
    %v1532 = vadd.f32 %v1530, %v1531
    %v1533 = vmul.f32 %v1532, %v526
    %v1534 = vadd.f32 %v1533, 1e-05
    %v1535 = vrsqrt.pop %v1534
    %v1536 = vmul.f32 %v1535, %v1443
    %v1537 = vmul.f32 %v1526, %v1536
    %v1538 = vmul.f32 %v1527, %v1536
    %v1539 = vmul.f32 %v1472, %v1537
    %v1540 = vmul.f32 %v1473, %v1538
    %v1541 = vsub.f32 %v1445, %v1539
    %v1542 = vsub.f32 %v1445, %v1540
    %v1543 = vlaneseq
    %v1544 = vshrl.u32 %v1543, 7
    %v1545 = vsub.s32 0, %v1544
    %v1546 = vrot.slane %v1537, %v1545
    %v1547 = vlaneseq
    %v1548 = vshrl.u32 %v1547, 7
    %v1549 = vsub.s32 0, %v1548
    %v1550 = vrot.slane %v1538, %v1549
    %v1551 = vmul.f32 %v1364, %v1546
    %v1552 = vmul.f32 %v1369, %v1546
    %v1553 = vmul.f32 %v1374, %v1546
    %v1554 = vmul.f32 %v1379, %v1546
    %v1555 = vmul.f32 %v1384, %v1546
    %v1556 = vmul.f32 %v1389, %v1546
    %v1557 = vmul.f32 %v1394, %v1546
    %v1558 = vmul.f32 %v1399, %v1546
    %v1559 = vmul.f32 %v1404, %v1550
    %v1560 = vmul.f32 %v1409, %v1550
    %v1561 = vmul.f32 %v1414, %v1550
    %v1562 = vmul.f32 %v1419, %v1550
    %v1563 = vmul.f32 %v1424, %v1550
    %v1564 = vmul.f32 %v1429, %v1550
    %v1565 = vmul.f32 %v1434, %v1550
    %v1566 = vmul.f32 %v1439, %v1550
    %v1569 = vlaneseq
    %v1570 = vshrl.u32 %v1569, 7
    %v1571 = vsub.s32 0, %v1570
    %v1572 = vrot.slane %v1541, %v1571
    %v1573 = vlaneseq
    %v1574 = vshrl.u32 %v1573, 7
    %v1575 = vsub.s32 0, %v1574
    %v1576 = vrot.slane %v1542, %v1575
    %v1579 = vadd.f32 %v1551, %v1572
    %v1580 = vadd.f32 %v1552, %v1572
    %v1581 = vadd.f32 %v1553, %v1572
    %v1582 = vadd.f32 %v1554, %v1572
    %v1583 = vadd.f32 %v1555, %v1572
    %v1584 = vadd.f32 %v1556, %v1572
    %v1585 = vadd.f32 %v1557, %v1572
    %v1586 = vadd.f32 %v1558, %v1572
    %v1587 = vadd.f32 %v1559, %v1576
    %v1588 = vadd.f32 %v1560, %v1576
    %v1589 = vadd.f32 %v1561, %v1576
    %v1590 = vadd.f32 %v1562, %v1576
    %v1591 = vadd.f32 %v1563, %v1576
    %v1592 = vadd.f32 %v1564, %v1576
    %v1593 = vadd.f32 %v1565, %v1576
    %v1594 = vadd.f32 %v1566, %v1576
    %v1595 = vmax.f32 %v1579, 0.0
    %v1596 = vmax.f32 %v1580, 0.0
    %v1597 = vmax.f32 %v1581, 0.0
    %v1598 = vmax.f32 %v1582, 0.0
    %v1599 = vmax.f32 %v1583, 0.0
    %v1600 = vmax.f32 %v1584, 0.0
    %v1601 = vmax.f32 %v1585, 0.0
    %v1602 = vmax.f32 %v1586, 0.0
    %v1603 = vmax.f32 %v1587, 0.0
    %v1604 = vmax.f32 %v1588, 0.0
    %v1605 = vmax.f32 %v1589, 0.0
    %v1606 = vmax.f32 %v1590, 0.0
    %v1607 = vmax.f32 %v1591, 0.0
    %v1608 = vmax.f32 %v1592, 0.0
    %v1609 = vmax.f32 %v1593, 0.0
    %v1610 = vmax.f32 %v1594, 0.0
    %v1611 = vadd.f32 %v1595, %v933
    %v1612 = vadd.f32 %v1596, %v934
    %v1613 = vadd.f32 %v1597, %v935
    %v1614 = vadd.f32 %v1598, %v936
    %v1615 = vadd.f32 %v1599, %v937
    %v1616 = vadd.f32 %v1600, %v938
    %v1617 = vadd.f32 %v1601, %v939
    %v1618 = vadd.f32 %v1602, %v940
    %v1619 = vadd.f32 %v1603, %v941
    %v1620 = vadd.f32 %v1604, %v942
    %v1621 = vadd.f32 %v1605, %v943
    %v1622 = vadd.f32 %v1606, %v944
    %v1623 = vadd.f32 %v1607, %v945
    %v1624 = vadd.f32 %v1608, %v946
    %v1625 = vadd.f32 %v1609, %v947
    %v1626 = vadd.f32 %v1610, %v948
    %s1627 = scalar_lea.vmem %s3, 256
    %v1628 = vld [vmem:[%s1627] sm:$0xff]
    %v1629 = vld [vmem:[%s1627 + $0x8] sm:$0xff]
    %v1630 = vld [vmem:[%s1627 + $0x10] sm:$0xff]
    %v1631 = vld [vmem:[%s1627 + $0x18] sm:$0xff]
    %v1632 = vld [vmem:[%s1627 + $0x20] sm:$0xff]
    %v1633 = vld [vmem:[%s1627 + $0x28] sm:$0xff]
    %v1634 = vld [vmem:[%s1627 + $0x30] sm:$0xff]
    %v1635 = vld [vmem:[%s1627 + $0x38] sm:$0xff]
    %v1636 = vld [vmem:[%s1627 + $0x40] sm:$0xff]
    %v1637 = vld [vmem:[%s1627 + $0x48] sm:$0xff]
    %v1638 = vld [vmem:[%s1627 + $0x50] sm:$0xff]
    %v1639 = vld [vmem:[%s1627 + $0x58] sm:$0xff]
    %v1640 = vld [vmem:[%s1627 + $0x60] sm:$0xff]
    %v1641 = vld [vmem:[%s1627 + $0x68] sm:$0xff]
    %v1642 = vld [vmem:[%s1627 + $0x70] sm:$0xff]
    %v1643 = vld [vmem:[%s1627 + $0x78] sm:$0xff]
    %1644 = vmatprep.subr.mxu0 0.0
    %1645 = vmatpush1.msra.mxu0 %v1643
    %1646 = vmatprep.subr.mxu0 0.0
    %1647 = vmatpush1.msra.mxu0 %v1642
    %1648 = vmatprep.subr.mxu0 0.0
    %1649 = vmatpush1.msra.mxu0 %v1641
    %1650 = vmatprep.subr.mxu0 0.0
    %1651 = vmatpush1.msra.mxu0 %v1640
    %1652 = vmatprep.subr.mxu0 0.0
    %1653 = vmatpush1.msra.mxu0 %v1639
    %1654 = vmatprep.subr.mxu0 0.0
    %1655 = vmatpush1.msra.mxu0 %v1638
    %1656 = vmatprep.subr.mxu0 0.0
    %1657 = vmatpush1.msra.mxu0 %v1637
    %1658 = vmatprep.subr.mxu0 0.0
    %1659 = vmatpush1.msra.mxu0 %v1636
    %1660 = vmatprep.subr.mxu0 0.0
    %1661 = vmatpush1.msra.mxu0 %v1635
    %1662 = vmatprep.subr.mxu0 0.0
    %1663 = vmatpush1.msra.mxu0 %v1634
    %1664 = vmatprep.subr.mxu0 0.0
    %1665 = vmatpush1.msra.mxu0 %v1633
    %1666 = vmatprep.subr.mxu0 0.0
    %1667 = vmatpush1.msra.mxu0 %v1632
    %1668 = vmatprep.subr.mxu0 0.0
    %1669 = vmatpush1.msra.mxu0 %v1631
    %1670 = vmatprep.subr.mxu0 0.0
    %1671 = vmatpush1.msra.mxu0 %v1630
    %1672 = vmatprep.subr.mxu0 0.0
    %1673 = vmatpush1.msra.mxu0 %v1629
    %1674 = vmatprep.subr.mxu0 0.0
    %1675 = vmatpush1.msra.mxu0 %v1628
    %1676 = vmatprep.subr.mxu0 0.0
    %1677 = vmatpush2.msra.mxu0 0.0
    %1678 = vmatprep.subr.mxu0 0.0
    %1679 = vmatpush2.msra.mxu0 0.0
    %1680 = vmatprep.subr.mxu0 0.0
    %1681 = vmatpush2.msra.mxu0 0.0
    %1682 = vmatprep.subr.mxu0 0.0
    %1683 = vmatpush2.msra.mxu0 0.0
    %1684 = vmatprep.subr.mxu0 0.0
    %1685 = vmatpush2.msra.mxu0 0.0
    %1686 = vmatprep.subr.mxu0 0.0
    %1687 = vmatpush2.msra.mxu0 0.0
    %1688 = vmatprep.subr.mxu0 0.0
    %1689 = vmatpush2.msra.mxu0 0.0
    %1690 = vmatprep.subr.mxu0 0.0
    %1691 = vmatpush2.msra.mxu0 0.0
    %1692 = vmatprep.subr.mxu0 0.0
    %1693 = vmatpush2.msra.mxu0 0.0
    %1694 = vmatprep.subr.mxu0 0.0
    %1695 = vmatpush2.msra.mxu0 0.0
    %1696 = vmatprep.subr.mxu0 0.0
    %1697 = vmatpush2.msra.mxu0 0.0
    %1698 = vmatprep.subr.mxu0 0.0
    %1699 = vmatpush2.msra.mxu0 0.0
    %1700 = vmatprep.subr.mxu0 0.0
    %1701 = vmatpush2.msra.mxu0 0.0
    %1702 = vmatprep.subr.mxu0 0.0
    %1703 = vmatpush2.msra.mxu0 0.0
    %1704 = vmatprep.subr.mxu0 0.0
    %1705 = vmatpush2.msra.mxu0 0.0
    %1706 = vmatprep.subr.mxu0 0.0
    %1707 = vmatpush2.msra.mxu0 0.0
    %1708 = vmatprep.mubr.f32.mxu0 0.0
    %1709 = vmatmul.mubr.f32.gmra.mxu0 %v1611
    %v1710 = vpop.f32.mrf.mxu0
    %v1711 = vadd.f32 0.0, %v1710
    %v1712 = vpop.f32.mrf.mxu0
    %1713 = vmatprep.mubr.f32.mxu0 0.0
    %1714 = vmatmul.mubr.f32.gmra.mxu0 %v1612
    %v1715 = vpop.f32.mrf.mxu0
    %v1716 = vadd.f32 0.0, %v1715
    %v1717 = vpop.f32.mrf.mxu0
    %1718 = vmatprep.mubr.f32.mxu0 0.0
    %1719 = vmatmul.mubr.f32.gmra.mxu0 %v1613
    %v1720 = vpop.f32.mrf.mxu0
    %v1721 = vadd.f32 0.0, %v1720
    %v1722 = vpop.f32.mrf.mxu0
    %1723 = vmatprep.mubr.f32.mxu0 0.0
    %1724 = vmatmul.mubr.f32.gmra.mxu0 %v1614
    %v1725 = vpop.f32.mrf.mxu0
    %v1726 = vadd.f32 0.0, %v1725
    %v1727 = vpop.f32.mrf.mxu0
    %1728 = vmatprep.mubr.f32.mxu0 0.0
    %1729 = vmatmul.mubr.f32.gmra.mxu0 %v1615
    %v1730 = vpop.f32.mrf.mxu0
    %v1731 = vadd.f32 0.0, %v1730
    %v1732 = vpop.f32.mrf.mxu0
    %1733 = vmatprep.mubr.f32.mxu0 0.0
    %1734 = vmatmul.mubr.f32.gmra.mxu0 %v1616
    %v1735 = vpop.f32.mrf.mxu0
    %v1736 = vadd.f32 0.0, %v1735
    %v1737 = vpop.f32.mrf.mxu0
    %1738 = vmatprep.mubr.f32.mxu0 0.0
    %1739 = vmatmul.mubr.f32.gmra.mxu0 %v1617
    %v1740 = vpop.f32.mrf.mxu0
    %v1741 = vadd.f32 0.0, %v1740
    %v1742 = vpop.f32.mrf.mxu0
    %1743 = vmatprep.mubr.f32.mxu0 0.0
    %1744 = vmatmul.mubr.f32.gmra.mxu0 %v1618
    %v1745 = vpop.f32.mrf.mxu0
    %v1746 = vadd.f32 0.0, %v1745
    %v1747 = vpop.f32.mrf.mxu0
    %1748 = vmatprep.mubr.f32.mxu0 0.0
    %1749 = vmatmul.mubr.f32.gmra.mxu0 %v1619
    %v1750 = vpop.f32.mrf.mxu0
    %v1751 = vadd.f32 0.0, %v1750
    %v1752 = vpop.f32.mrf.mxu0
    %1753 = vmatprep.mubr.f32.mxu0 0.0
    %1754 = vmatmul.mubr.f32.gmra.mxu0 %v1620
    %v1755 = vpop.f32.mrf.mxu0
    %v1756 = vadd.f32 0.0, %v1755
    %v1757 = vpop.f32.mrf.mxu0
    %1758 = vmatprep.mubr.f32.mxu0 0.0
    %1759 = vmatmul.mubr.f32.gmra.mxu0 %v1621
    %v1760 = vpop.f32.mrf.mxu0
    %v1761 = vadd.f32 0.0, %v1760
    %v1762 = vpop.f32.mrf.mxu0
    %1763 = vmatprep.mubr.f32.mxu0 0.0
    %1764 = vmatmul.mubr.f32.gmra.mxu0 %v1622
    %v1765 = vpop.f32.mrf.mxu0
    %v1766 = vadd.f32 0.0, %v1765
    %v1767 = vpop.f32.mrf.mxu0
    %1768 = vmatprep.mubr.f32.mxu0 0.0
    %1769 = vmatmul.mubr.f32.gmra.mxu0 %v1623
    %v1770 = vpop.f32.mrf.mxu0
    %v1771 = vadd.f32 0.0, %v1770
    %v1772 = vpop.f32.mrf.mxu0
    %1773 = vmatprep.mubr.f32.mxu0 0.0
    %1774 = vmatmul.mubr.f32.gmra.mxu0 %v1624
    %v1775 = vpop.f32.mrf.mxu0
    %v1776 = vadd.f32 0.0, %v1775
    %v1777 = vpop.f32.mrf.mxu0
    %1778 = vmatprep.mubr.f32.mxu0 0.0
    %1779 = vmatmul.mubr.f32.gmra.mxu0 %v1625
    %v1780 = vpop.f32.mrf.mxu0
    %v1781 = vadd.f32 0.0, %v1780
    %v1782 = vpop.f32.mrf.mxu0
    %1783 = vmatprep.mubr.f32.mxu0 0.0
    %1784 = vmatmul.mubr.f32.gmra.mxu0 %v1626
    %v1785 = vpop.f32.mrf.mxu0
    %v1786 = vadd.f32 0.0, %v1785
    %v1787 = vpop.f32.mrf.mxu0
    %1788 = vdwg.mxu0
    %s1789 = scalar_lea.vmem %s4, 2
    %v1790 = vld [vmem:[%s1789] sm:$0x1]
    %s1791 = scalar_lea.vmem %s5, 2
    %v1792 = vld [vmem:[%s1791] sm:$0x1]
    %v1793 = vadd.f32 %v1711, %v1716
    %v1794 = vadd.f32 %v1793, %v1721
    %v1795 = vadd.f32 %v1794, %v1726
    %v1796 = vadd.f32 %v1795, %v1731
    %v1797 = vadd.f32 %v1796, %v1736
    %v1798 = vadd.f32 %v1797, %v1741
    %v1799 = vadd.f32 %v1798, %v1746
    %v1800 = vrot.slane %v1799, 4
    %v1801 = vadd.f32 %v1799, %v1800
    %v1802 = vrot.slane %v1801, 2
    %v1803 = vadd.f32 %v1801, %v1802
    %v1804 = vrot.slane %v1803, 1
    %v1805 = vadd.f32 %v1803, %v1804
    %v1806 = vadd.f32 %v1751, %v1756
    %v1807 = vadd.f32 %v1806, %v1761
    %v1808 = vadd.f32 %v1807, %v1766
    %v1809 = vadd.f32 %v1808, %v1771
    %v1810 = vadd.f32 %v1809, %v1776
    %v1811 = vadd.f32 %v1810, %v1781
    %v1812 = vadd.f32 %v1811, %v1786
    %v1813 = vrot.slane %v1812, 4
    %v1814 = vadd.f32 %v1812, %v1813
    %v1815 = vrot.slane %v1814, 2
    %v1816 = vadd.f32 %v1814, %v1815
    %v1817 = vrot.slane %v1816, 1
    %v1818 = vadd.f32 %v1816, %v1817
    %v1819 = vmul.f32 %v1805, %v464
    %v1820 = vmul.f32 %v1818, %v464
    %v1821 = vmul.f32 %v1711, %v1711
    %v1822 = vmul.f32 %v1716, %v1716
    %v1823 = vmul.f32 %v1721, %v1721
    %v1824 = vmul.f32 %v1726, %v1726
    %v1825 = vmul.f32 %v1731, %v1731
    %v1826 = vmul.f32 %v1736, %v1736
    %v1827 = vmul.f32 %v1741, %v1741
    %v1828 = vmul.f32 %v1746, %v1746
    %v1829 = vmul.f32 %v1751, %v1751
    %v1830 = vmul.f32 %v1756, %v1756
    %v1831 = vmul.f32 %v1761, %v1761
    %v1832 = vmul.f32 %v1766, %v1766
    %v1833 = vmul.f32 %v1771, %v1771
    %v1834 = vmul.f32 %v1776, %v1776
    %v1835 = vmul.f32 %v1781, %v1781
    %v1836 = vmul.f32 %v1786, %v1786
    %v1837 = vadd.f32 %v1821, %v1822
    %v1838 = vadd.f32 %v1837, %v1823
    %v1839 = vadd.f32 %v1838, %v1824
    %v1840 = vadd.f32 %v1839, %v1825
    %v1841 = vadd.f32 %v1840, %v1826
    %v1842 = vadd.f32 %v1841, %v1827
    %v1843 = vadd.f32 %v1842, %v1828
    %v1844 = vrot.slane %v1843, 4
    %v1845 = vadd.f32 %v1843, %v1844
    %v1846 = vrot.slane %v1845, 2
    %v1847 = vadd.f32 %v1845, %v1846
    %v1848 = vrot.slane %v1847, 1
    %v1849 = vadd.f32 %v1847, %v1848
    %v1850 = vadd.f32 %v1829, %v1830
    %v1851 = vadd.f32 %v1850, %v1831
    %v1852 = vadd.f32 %v1851, %v1832
    %v1853 = vadd.f32 %v1852, %v1833
    %v1854 = vadd.f32 %v1853, %v1834
    %v1855 = vadd.f32 %v1854, %v1835
    %v1856 = vadd.f32 %v1855, %v1836
    %v1857 = vrot.slane %v1856, 4
    %v1858 = vadd.f32 %v1856, %v1857
    %v1859 = vrot.slane %v1858, 2
    %v1860 = vadd.f32 %v1858, %v1859
    %v1861 = vrot.slane %v1860, 1
    %v1862 = vadd.f32 %v1860, %v1861
    %v1863 = vmul.f32 %v1849, %v464
    %v1864 = vmul.f32 %v1862, %v464
    %v1865 = vmul.f32 %v1819, %v1819
    %v1866 = vmul.f32 %v1820, %v1820
    %v1867 = vsub.f32 %v1863, %v1865
    %v1868 = vsub.f32 %v1864, %v1866
    %v1869 = vmax.f32 %v1867, 0.0
    %v1870 = vmax.f32 %v1868, 0.0
    %v1871 = vadd.f32 %v1869, 1e-05
    %v1872 = vadd.f32 %v1870, 1e-05
    %v1873 = vrsqrt.pop %v1871
    %v1874 = vrsqrt.pop %v1872
    %v1875 = vmul.f32 %v1873, %v1873
    %v1876 = vmul.f32 %v1874, %v1874
    %v1877 = vmul.f32 %v1869, %v1875
    %v1878 = vmul.f32 %v1870, %v1876
    %v1879 = vadd.f32 %v1877, %v1878
    %v1880 = vmul.f32 %v1879, %v526
    %v1881 = vadd.f32 %v1880, 1e-05
    %v1882 = vrsqrt.pop %v1881
    %v1883 = vmul.f32 %v1882, %v1790
    %v1884 = vmul.f32 %v1873, %v1883
    %v1885 = vmul.f32 %v1874, %v1883
    %v1886 = vmul.f32 %v1819, %v1884
    %v1887 = vmul.f32 %v1820, %v1885
    %v1888 = vsub.f32 %v1792, %v1886
    %v1889 = vsub.f32 %v1792, %v1887
    %v1890 = vlaneseq
    %v1891 = vshrl.u32 %v1890, 7
    %v1892 = vsub.s32 0, %v1891
    %v1893 = vrot.slane %v1884, %v1892
    %v1894 = vlaneseq
    %v1895 = vshrl.u32 %v1894, 7
    %v1896 = vsub.s32 0, %v1895
    %v1897 = vrot.slane %v1885, %v1896
    %v1898 = vmul.f32 %v1711, %v1893
    %v1899 = vmul.f32 %v1716, %v1893
    %v1900 = vmul.f32 %v1721, %v1893
    %v1901 = vmul.f32 %v1726, %v1893
    %v1902 = vmul.f32 %v1731, %v1893
    %v1903 = vmul.f32 %v1736, %v1893
    %v1904 = vmul.f32 %v1741, %v1893
    %v1905 = vmul.f32 %v1746, %v1893
    %v1906 = vmul.f32 %v1751, %v1897
    %v1907 = vmul.f32 %v1756, %v1897
    %v1908 = vmul.f32 %v1761, %v1897
    %v1909 = vmul.f32 %v1766, %v1897
    %v1910 = vmul.f32 %v1771, %v1897
    %v1911 = vmul.f32 %v1776, %v1897
    %v1912 = vmul.f32 %v1781, %v1897
    %v1913 = vmul.f32 %v1786, %v1897
    %v1916 = vlaneseq
    %v1917 = vshrl.u32 %v1916, 7
    %v1918 = vsub.s32 0, %v1917
    %v1919 = vrot.slane %v1888, %v1918
    %v1920 = vlaneseq
    %v1921 = vshrl.u32 %v1920, 7
    %v1922 = vsub.s32 0, %v1921
    %v1923 = vrot.slane %v1889, %v1922
    %v1926 = vadd.f32 %v1898, %v1919
    %v1927 = vadd.f32 %v1899, %v1919
    %v1928 = vadd.f32 %v1900, %v1919
    %v1929 = vadd.f32 %v1901, %v1919
    %v1930 = vadd.f32 %v1902, %v1919
    %v1931 = vadd.f32 %v1903, %v1919
    %v1932 = vadd.f32 %v1904, %v1919
    %v1933 = vadd.f32 %v1905, %v1919
    %v1934 = vadd.f32 %v1906, %v1923
    %v1935 = vadd.f32 %v1907, %v1923
    %v1936 = vadd.f32 %v1908, %v1923
    %v1937 = vadd.f32 %v1909, %v1923
    %v1938 = vadd.f32 %v1910, %v1923
    %v1939 = vadd.f32 %v1911, %v1923
    %v1940 = vadd.f32 %v1912, %v1923
    %v1941 = vadd.f32 %v1913, %v1923
    %v1942 = vmax.f32 %v1926, 0.0
    %v1943 = vmax.f32 %v1927, 0.0
    %v1944 = vmax.f32 %v1928, 0.0
    %v1945 = vmax.f32 %v1929, 0.0
    %v1946 = vmax.f32 %v1930, 0.0
    %v1947 = vmax.f32 %v1931, 0.0
    %v1948 = vmax.f32 %v1932, 0.0
    %v1949 = vmax.f32 %v1933, 0.0
    %v1950 = vmax.f32 %v1934, 0.0
    %v1951 = vmax.f32 %v1935, 0.0
    %v1952 = vmax.f32 %v1936, 0.0
    %v1953 = vmax.f32 %v1937, 0.0
    %v1954 = vmax.f32 %v1938, 0.0
    %v1955 = vmax.f32 %v1939, 0.0
    %v1956 = vmax.f32 %v1940, 0.0
    %v1957 = vmax.f32 %v1941, 0.0
    %s1958 = scalar_lea.vmem %s6, 256
    %v1959 = vld [vmem:[%s1958] sm:$0xff]
    %v1960 = vld [vmem:[%s1958 + $0x8] sm:$0xff]
    %v1961 = vld [vmem:[%s1958 + $0x10] sm:$0xff]
    %v1962 = vld [vmem:[%s1958 + $0x18] sm:$0xff]
    %v1963 = vld [vmem:[%s1958 + $0x20] sm:$0xff]
    %v1964 = vld [vmem:[%s1958 + $0x28] sm:$0xff]
    %v1965 = vld [vmem:[%s1958 + $0x30] sm:$0xff]
    %v1966 = vld [vmem:[%s1958 + $0x38] sm:$0xff]
    %v1967 = vld [vmem:[%s1958 + $0x40] sm:$0xff]
    %v1968 = vld [vmem:[%s1958 + $0x48] sm:$0xff]
    %v1969 = vld [vmem:[%s1958 + $0x50] sm:$0xff]
    %v1970 = vld [vmem:[%s1958 + $0x58] sm:$0xff]
    %v1971 = vld [vmem:[%s1958 + $0x60] sm:$0xff]
    %v1972 = vld [vmem:[%s1958 + $0x68] sm:$0xff]
    %v1973 = vld [vmem:[%s1958 + $0x70] sm:$0xff]
    %v1974 = vld [vmem:[%s1958 + $0x78] sm:$0xff]
    %1975 = vmatprep.subr.mxu0 0.0
    %1976 = vmatpush1.msra.mxu0 %v1974
    %1977 = vmatprep.subr.mxu0 0.0
    %1978 = vmatpush1.msra.mxu0 %v1973
    %1979 = vmatprep.subr.mxu0 0.0
    %1980 = vmatpush1.msra.mxu0 %v1972
    %1981 = vmatprep.subr.mxu0 0.0
    %1982 = vmatpush1.msra.mxu0 %v1971
    %1983 = vmatprep.subr.mxu0 0.0
    %1984 = vmatpush1.msra.mxu0 %v1970
    %1985 = vmatprep.subr.mxu0 0.0
    %1986 = vmatpush1.msra.mxu0 %v1969
    %1987 = vmatprep.subr.mxu0 0.0
    %1988 = vmatpush1.msra.mxu0 %v1968
    %1989 = vmatprep.subr.mxu0 0.0
    %1990 = vmatpush1.msra.mxu0 %v1967
    %1991 = vmatprep.subr.mxu0 0.0
    %1992 = vmatpush1.msra.mxu0 %v1966
    %1993 = vmatprep.subr.mxu0 0.0
    %1994 = vmatpush1.msra.mxu0 %v1965
    %1995 = vmatprep.subr.mxu0 0.0
    %1996 = vmatpush1.msra.mxu0 %v1964
    %1997 = vmatprep.subr.mxu0 0.0
    %1998 = vmatpush1.msra.mxu0 %v1963
    %1999 = vmatprep.subr.mxu0 0.0
    %2000 = vmatpush1.msra.mxu0 %v1962
    %2001 = vmatprep.subr.mxu0 0.0
    %2002 = vmatpush1.msra.mxu0 %v1961
    %2003 = vmatprep.subr.mxu0 0.0
    %2004 = vmatpush1.msra.mxu0 %v1960
    %2005 = vmatprep.subr.mxu0 0.0
    %2006 = vmatpush1.msra.mxu0 %v1959
    %2007 = vmatprep.subr.mxu0 0.0
    %2008 = vmatpush2.msra.mxu0 0.0
    %2009 = vmatprep.subr.mxu0 0.0
    %2010 = vmatpush2.msra.mxu0 0.0
    %2011 = vmatprep.subr.mxu0 0.0
    %2012 = vmatpush2.msra.mxu0 0.0
    %2013 = vmatprep.subr.mxu0 0.0
    %2014 = vmatpush2.msra.mxu0 0.0
    %2015 = vmatprep.subr.mxu0 0.0
    %2016 = vmatpush2.msra.mxu0 0.0
    %2017 = vmatprep.subr.mxu0 0.0
    %2018 = vmatpush2.msra.mxu0 0.0
    %2019 = vmatprep.subr.mxu0 0.0
    %2020 = vmatpush2.msra.mxu0 0.0
    %2021 = vmatprep.subr.mxu0 0.0
    %2022 = vmatpush2.msra.mxu0 0.0
    %2023 = vmatprep.subr.mxu0 0.0
    %2024 = vmatpush2.msra.mxu0 0.0
    %2025 = vmatprep.subr.mxu0 0.0
    %2026 = vmatpush2.msra.mxu0 0.0
    %2027 = vmatprep.subr.mxu0 0.0
    %2028 = vmatpush2.msra.mxu0 0.0
    %2029 = vmatprep.subr.mxu0 0.0
    %2030 = vmatpush2.msra.mxu0 0.0
    %2031 = vmatprep.subr.mxu0 0.0
    %2032 = vmatpush2.msra.mxu0 0.0
    %2033 = vmatprep.subr.mxu0 0.0
    %2034 = vmatpush2.msra.mxu0 0.0
    %2035 = vmatprep.subr.mxu0 0.0
    %2036 = vmatpush2.msra.mxu0 0.0
    %2037 = vmatprep.subr.mxu0 0.0
    %2038 = vmatpush2.msra.mxu0 0.0
    %2039 = vmatprep.mubr.f32.mxu0 0.0
    %2040 = vmatmul.mubr.f32.gmra.mxu0 %v1942
    %v2041 = vpop.f32.mrf.mxu0
    %v2042 = vadd.f32 0.0, %v2041
    %v2043 = vpop.f32.mrf.mxu0
    %2044 = vmatprep.mubr.f32.mxu0 0.0
    %2045 = vmatmul.mubr.f32.gmra.mxu0 %v1943
    %v2046 = vpop.f32.mrf.mxu0
    %v2047 = vadd.f32 0.0, %v2046
    %v2048 = vpop.f32.mrf.mxu0
    %2049 = vmatprep.mubr.f32.mxu0 0.0
    %2050 = vmatmul.mubr.f32.gmra.mxu0 %v1944
    %v2051 = vpop.f32.mrf.mxu0
    %v2052 = vadd.f32 0.0, %v2051
    %v2053 = vpop.f32.mrf.mxu0
    %2054 = vmatprep.mubr.f32.mxu0 0.0
    %2055 = vmatmul.mubr.f32.gmra.mxu0 %v1945
    %v2056 = vpop.f32.mrf.mxu0
    %v2057 = vadd.f32 0.0, %v2056
    %v2058 = vpop.f32.mrf.mxu0
    %2059 = vmatprep.mubr.f32.mxu0 0.0
    %2060 = vmatmul.mubr.f32.gmra.mxu0 %v1946
    %v2061 = vpop.f32.mrf.mxu0
    %v2062 = vadd.f32 0.0, %v2061
    %v2063 = vpop.f32.mrf.mxu0
    %2064 = vmatprep.mubr.f32.mxu0 0.0
    %2065 = vmatmul.mubr.f32.gmra.mxu0 %v1947
    %v2066 = vpop.f32.mrf.mxu0
    %v2067 = vadd.f32 0.0, %v2066
    %v2068 = vpop.f32.mrf.mxu0
    %2069 = vmatprep.mubr.f32.mxu0 0.0
    %2070 = vmatmul.mubr.f32.gmra.mxu0 %v1948
    %v2071 = vpop.f32.mrf.mxu0
    %v2072 = vadd.f32 0.0, %v2071
    %v2073 = vpop.f32.mrf.mxu0
    %2074 = vmatprep.mubr.f32.mxu0 0.0
    %2075 = vmatmul.mubr.f32.gmra.mxu0 %v1949
    %v2076 = vpop.f32.mrf.mxu0
    %v2077 = vadd.f32 0.0, %v2076
    %v2078 = vpop.f32.mrf.mxu0
    %2079 = vmatprep.mubr.f32.mxu0 0.0
    %2080 = vmatmul.mubr.f32.gmra.mxu0 %v1950
    %v2081 = vpop.f32.mrf.mxu0
    %v2082 = vadd.f32 0.0, %v2081
    %v2083 = vpop.f32.mrf.mxu0
    %2084 = vmatprep.mubr.f32.mxu0 0.0
    %2085 = vmatmul.mubr.f32.gmra.mxu0 %v1951
    %v2086 = vpop.f32.mrf.mxu0
    %v2087 = vadd.f32 0.0, %v2086
    %v2088 = vpop.f32.mrf.mxu0
    %2089 = vmatprep.mubr.f32.mxu0 0.0
    %2090 = vmatmul.mubr.f32.gmra.mxu0 %v1952
    %v2091 = vpop.f32.mrf.mxu0
    %v2092 = vadd.f32 0.0, %v2091
    %v2093 = vpop.f32.mrf.mxu0
    %2094 = vmatprep.mubr.f32.mxu0 0.0
    %2095 = vmatmul.mubr.f32.gmra.mxu0 %v1953
    %v2096 = vpop.f32.mrf.mxu0
    %v2097 = vadd.f32 0.0, %v2096
    %v2098 = vpop.f32.mrf.mxu0
    %2099 = vmatprep.mubr.f32.mxu0 0.0
    %2100 = vmatmul.mubr.f32.gmra.mxu0 %v1954
    %v2101 = vpop.f32.mrf.mxu0
    %v2102 = vadd.f32 0.0, %v2101
    %v2103 = vpop.f32.mrf.mxu0
    %2104 = vmatprep.mubr.f32.mxu0 0.0
    %2105 = vmatmul.mubr.f32.gmra.mxu0 %v1955
    %v2106 = vpop.f32.mrf.mxu0
    %v2107 = vadd.f32 0.0, %v2106
    %v2108 = vpop.f32.mrf.mxu0
    %2109 = vmatprep.mubr.f32.mxu0 0.0
    %2110 = vmatmul.mubr.f32.gmra.mxu0 %v1956
    %v2111 = vpop.f32.mrf.mxu0
    %v2112 = vadd.f32 0.0, %v2111
    %v2113 = vpop.f32.mrf.mxu0
    %2114 = vmatprep.mubr.f32.mxu0 0.0
    %2115 = vmatmul.mubr.f32.gmra.mxu0 %v1957
    %v2116 = vpop.f32.mrf.mxu0
    %v2117 = vadd.f32 0.0, %v2116
    %v2118 = vpop.f32.mrf.mxu0
    %2119 = vdwg.mxu0
    %s2120 = scalar_lea.vmem %s7, 2
    %v2121 = vld [vmem:[%s2120] sm:$0x1]
    %s2122 = scalar_lea.vmem %s8, 2
    %v2123 = vld [vmem:[%s2122] sm:$0x1]
    %v2124 = vadd.f32 %v2042, %v2047
    %v2125 = vadd.f32 %v2124, %v2052
    %v2126 = vadd.f32 %v2125, %v2057
    %v2127 = vadd.f32 %v2126, %v2062
    %v2128 = vadd.f32 %v2127, %v2067
    %v2129 = vadd.f32 %v2128, %v2072
    %v2130 = vadd.f32 %v2129, %v2077
    %v2131 = vrot.slane %v2130, 4
    %v2132 = vadd.f32 %v2130, %v2131
    %v2133 = vrot.slane %v2132, 2
    %v2134 = vadd.f32 %v2132, %v2133
    %v2135 = vrot.slane %v2134, 1
    %v2136 = vadd.f32 %v2134, %v2135
    %v2137 = vadd.f32 %v2082, %v2087
    %v2138 = vadd.f32 %v2137, %v2092
    %v2139 = vadd.f32 %v2138, %v2097
    %v2140 = vadd.f32 %v2139, %v2102
    %v2141 = vadd.f32 %v2140, %v2107
    %v2142 = vadd.f32 %v2141, %v2112
    %v2143 = vadd.f32 %v2142, %v2117
    %v2144 = vrot.slane %v2143, 4
    %v2145 = vadd.f32 %v2143, %v2144
    %v2146 = vrot.slane %v2145, 2
    %v2147 = vadd.f32 %v2145, %v2146
    %v2148 = vrot.slane %v2147, 1
    %v2149 = vadd.f32 %v2147, %v2148
    %v2150 = vmul.f32 %v2136, %v464
    %v2151 = vmul.f32 %v2149, %v464
    %v2152 = vmul.f32 %v2042, %v2042
    %v2153 = vmul.f32 %v2047, %v2047
    %v2154 = vmul.f32 %v2052, %v2052
    %v2155 = vmul.f32 %v2057, %v2057
    %v2156 = vmul.f32 %v2062, %v2062
    %v2157 = vmul.f32 %v2067, %v2067
    %v2158 = vmul.f32 %v2072, %v2072
    %v2159 = vmul.f32 %v2077, %v2077
    %v2160 = vmul.f32 %v2082, %v2082
    %v2161 = vmul.f32 %v2087, %v2087
    %v2162 = vmul.f32 %v2092, %v2092
    %v2163 = vmul.f32 %v2097, %v2097
    %v2164 = vmul.f32 %v2102, %v2102
    %v2165 = vmul.f32 %v2107, %v2107
    %v2166 = vmul.f32 %v2112, %v2112
    %v2167 = vmul.f32 %v2117, %v2117
    %v2168 = vadd.f32 %v2152, %v2153
    %v2169 = vadd.f32 %v2168, %v2154
    %v2170 = vadd.f32 %v2169, %v2155
    %v2171 = vadd.f32 %v2170, %v2156
    %v2172 = vadd.f32 %v2171, %v2157
    %v2173 = vadd.f32 %v2172, %v2158
    %v2174 = vadd.f32 %v2173, %v2159
    %v2175 = vrot.slane %v2174, 4
    %v2176 = vadd.f32 %v2174, %v2175
    %v2177 = vrot.slane %v2176, 2
    %v2178 = vadd.f32 %v2176, %v2177
    %v2179 = vrot.slane %v2178, 1
    %v2180 = vadd.f32 %v2178, %v2179
    %v2181 = vadd.f32 %v2160, %v2161
    %v2182 = vadd.f32 %v2181, %v2162
    %v2183 = vadd.f32 %v2182, %v2163
    %v2184 = vadd.f32 %v2183, %v2164
    %v2185 = vadd.f32 %v2184, %v2165
    %v2186 = vadd.f32 %v2185, %v2166
    %v2187 = vadd.f32 %v2186, %v2167
    %v2188 = vrot.slane %v2187, 4
    %v2189 = vadd.f32 %v2187, %v2188
    %v2190 = vrot.slane %v2189, 2
    %v2191 = vadd.f32 %v2189, %v2190
    %v2192 = vrot.slane %v2191, 1
    %v2193 = vadd.f32 %v2191, %v2192
    %v2194 = vmul.f32 %v2180, %v464
    %v2195 = vmul.f32 %v2193, %v464
    %v2196 = vmul.f32 %v2150, %v2150
    %v2197 = vmul.f32 %v2151, %v2151
    %v2198 = vsub.f32 %v2194, %v2196
    %v2199 = vsub.f32 %v2195, %v2197
    %v2200 = vmax.f32 %v2198, 0.0
    %v2201 = vmax.f32 %v2199, 0.0
    %v2202 = vadd.f32 %v2200, 1e-05
    %v2203 = vadd.f32 %v2201, 1e-05
    %v2204 = vrsqrt.pop %v2202
    %v2205 = vrsqrt.pop %v2203
    %v2206 = vmul.f32 %v2204, %v2204
    %v2207 = vmul.f32 %v2205, %v2205
    %v2208 = vmul.f32 %v2200, %v2206
    %v2209 = vmul.f32 %v2201, %v2207
    %v2210 = vadd.f32 %v2208, %v2209
    %v2211 = vmul.f32 %v2210, %v526
    %v2212 = vadd.f32 %v2211, 1e-05
    %v2213 = vrsqrt.pop %v2212
    %v2214 = vmul.f32 %v2213, %v2121
    %v2215 = vmul.f32 %v2204, %v2214
    %v2216 = vmul.f32 %v2205, %v2214
    %v2217 = vmul.f32 %v2150, %v2215
    %v2218 = vmul.f32 %v2151, %v2216
    %v2219 = vsub.f32 %v2123, %v2217
    %v2220 = vsub.f32 %v2123, %v2218
    %v2221 = vlaneseq
    %v2222 = vshrl.u32 %v2221, 7
    %v2223 = vsub.s32 0, %v2222
    %v2224 = vrot.slane %v2215, %v2223
    %v2225 = vlaneseq
    %v2226 = vshrl.u32 %v2225, 7
    %v2227 = vsub.s32 0, %v2226
    %v2228 = vrot.slane %v2216, %v2227
    %v2229 = vmul.f32 %v2042, %v2224
    %v2230 = vmul.f32 %v2047, %v2224
    %v2231 = vmul.f32 %v2052, %v2224
    %v2232 = vmul.f32 %v2057, %v2224
    %v2233 = vmul.f32 %v2062, %v2224
    %v2234 = vmul.f32 %v2067, %v2224
    %v2235 = vmul.f32 %v2072, %v2224
    %v2236 = vmul.f32 %v2077, %v2224
    %v2237 = vmul.f32 %v2082, %v2228
    %v2238 = vmul.f32 %v2087, %v2228
    %v2239 = vmul.f32 %v2092, %v2228
    %v2240 = vmul.f32 %v2097, %v2228
    %v2241 = vmul.f32 %v2102, %v2228
    %v2242 = vmul.f32 %v2107, %v2228
    %v2243 = vmul.f32 %v2112, %v2228
    %v2244 = vmul.f32 %v2117, %v2228
    %v2247 = vlaneseq
    %v2248 = vshrl.u32 %v2247, 7
    %v2249 = vsub.s32 0, %v2248
    %v2250 = vrot.slane %v2219, %v2249
    %v2251 = vlaneseq
    %v2252 = vshrl.u32 %v2251, 7
    %v2253 = vsub.s32 0, %v2252
    %v2254 = vrot.slane %v2220, %v2253
    %v2257 = vadd.f32 %v2229, %v2250
    %v2258 = vadd.f32 %v2230, %v2250
    %v2259 = vadd.f32 %v2231, %v2250
    %v2260 = vadd.f32 %v2232, %v2250
    %v2261 = vadd.f32 %v2233, %v2250
    %v2262 = vadd.f32 %v2234, %v2250
    %v2263 = vadd.f32 %v2235, %v2250
    %v2264 = vadd.f32 %v2236, %v2250
    %v2265 = vadd.f32 %v2237, %v2254
    %v2266 = vadd.f32 %v2238, %v2254
    %v2267 = vadd.f32 %v2239, %v2254
    %v2268 = vadd.f32 %v2240, %v2254
    %v2269 = vadd.f32 %v2241, %v2254
    %v2270 = vadd.f32 %v2242, %v2254
    %v2271 = vadd.f32 %v2243, %v2254
    %v2272 = vadd.f32 %v2244, %v2254
    %v2273 = vmax.f32 %v2257, 0.0
    %v2274 = vmax.f32 %v2258, 0.0
    %v2275 = vmax.f32 %v2259, 0.0
    %v2276 = vmax.f32 %v2260, 0.0
    %v2277 = vmax.f32 %v2261, 0.0
    %v2278 = vmax.f32 %v2262, 0.0
    %v2279 = vmax.f32 %v2263, 0.0
    %v2280 = vmax.f32 %v2264, 0.0
    %v2281 = vmax.f32 %v2265, 0.0
    %v2282 = vmax.f32 %v2266, 0.0
    %v2283 = vmax.f32 %v2267, 0.0
    %v2284 = vmax.f32 %v2268, 0.0
    %v2285 = vmax.f32 %v2269, 0.0
    %v2286 = vmax.f32 %v2270, 0.0
    %v2287 = vmax.f32 %v2271, 0.0
    %v2288 = vmax.f32 %v2272, 0.0
    %v2289 = vadd.f32 %v2273, %v1611
    %v2290 = vadd.f32 %v2274, %v1612
    %v2291 = vadd.f32 %v2275, %v1613
    %v2292 = vadd.f32 %v2276, %v1614
    %v2293 = vadd.f32 %v2277, %v1615
    %v2294 = vadd.f32 %v2278, %v1616
    %v2295 = vadd.f32 %v2279, %v1617
    %v2296 = vadd.f32 %v2280, %v1618
    %v2297 = vadd.f32 %v2281, %v1619
    %v2298 = vadd.f32 %v2282, %v1620
    %v2299 = vadd.f32 %v2283, %v1621
    %v2300 = vadd.f32 %v2284, %v1622
    %v2301 = vadd.f32 %v2285, %v1623
    %v2302 = vadd.f32 %v2286, %v1624
    %v2303 = vadd.f32 %v2287, %v1625
    %v2304 = vadd.f32 %v2288, %v1626
    %v2305 = vld [vmem:[%s9] sm:$0x1]
    %v2307 = vlaneseq
    %v2308 = vshrl.u32 %v2307, 7
    %v2309 = vsub.s32 0, %v2308
    %v2310 = vrot.slane %v2305, %v2309
    %v2312 = vmul.f32 %v2289, %v2310
    %v2313 = vmul.f32 %v2290, %v2310
    %v2314 = vmul.f32 %v2291, %v2310
    %v2315 = vmul.f32 %v2292, %v2310
    %v2316 = vmul.f32 %v2293, %v2310
    %v2317 = vmul.f32 %v2294, %v2310
    %v2318 = vmul.f32 %v2295, %v2310
    %v2319 = vmul.f32 %v2296, %v2310
    %v2320 = vmul.f32 %v2297, %v2310
    %v2321 = vmul.f32 %v2298, %v2310
    %v2322 = vmul.f32 %v2299, %v2310
    %v2323 = vmul.f32 %v2300, %v2310
    %v2324 = vmul.f32 %v2301, %v2310
    %v2325 = vmul.f32 %v2302, %v2310
    %v2326 = vmul.f32 %v2303, %v2310
    %v2327 = vmul.f32 %v2304, %v2310
    %2328 = vadd.xlane.f32.xlu0 %v2312
    %v2329 = vpop.xlane.xlu0 %2328
    %2330 = vadd.xlane.f32.xlu0 %v2313
    %v2331 = vpop.xlane.xlu0 %2330
    %2332 = vadd.xlane.f32.xlu0 %v2314
    %v2333 = vpop.xlane.xlu0 %2332
    %2334 = vadd.xlane.f32.xlu0 %v2315
    %v2335 = vpop.xlane.xlu0 %2334
    %2336 = vadd.xlane.f32.xlu0 %v2316
    %v2337 = vpop.xlane.xlu0 %2336
    %2338 = vadd.xlane.f32.xlu0 %v2317
    %v2339 = vpop.xlane.xlu0 %2338
    %2340 = vadd.xlane.f32.xlu0 %v2318
    %v2341 = vpop.xlane.xlu0 %2340
    %2342 = vadd.xlane.f32.xlu0 %v2319
    %v2343 = vpop.xlane.xlu0 %2342
    %2344 = vadd.xlane.f32.xlu0 %v2320
    %v2345 = vpop.xlane.xlu0 %2344
    %2346 = vadd.xlane.f32.xlu0 %v2321
    %v2347 = vpop.xlane.xlu0 %2346
    %2348 = vadd.xlane.f32.xlu0 %v2322
    %v2349 = vpop.xlane.xlu0 %2348
    %2350 = vadd.xlane.f32.xlu0 %v2323
    %v2351 = vpop.xlane.xlu0 %2350
    %2352 = vadd.xlane.f32.xlu0 %v2324
    %v2353 = vpop.xlane.xlu0 %2352
    %2354 = vadd.xlane.f32.xlu0 %v2325
    %v2355 = vpop.xlane.xlu0 %2354
    %2356 = vadd.xlane.f32.xlu0 %v2326
    %v2357 = vpop.xlane.xlu0 %2356
    %2358 = vadd.xlane.f32.xlu0 %v2327
    %v2359 = vpop.xlane.xlu0 %2358
    %v2360 = vld [vmem:[#allocation2] sm:$0x1]
    %v2362 = vlaneseq
    %v2363 = vshrl.u32 %v2362, 7
    %v2364 = vsub.s32 0, %v2363
    %v2365 = vrot.slane %v2360, %v2364
    %2366 = vset.pattern.permute.xlu0 0
    %2367 = vperm.xlu0 %2366, %v2365
    %v2368 = vpop.permute.xlu0 %2367
    %v2370 = vadd.f32 %v2329, %v2368
    %v2371 = vadd.f32 %v2331, %v2368
    %v2372 = vadd.f32 %v2333, %v2368
    %v2373 = vadd.f32 %v2335, %v2368
    %v2374 = vadd.f32 %v2337, %v2368
    %v2375 = vadd.f32 %v2339, %v2368
    %v2376 = vadd.f32 %v2341, %v2368
    %v2377 = vadd.f32 %v2343, %v2368
    %v2378 = vadd.f32 %v2345, %v2368
    %v2379 = vadd.f32 %v2347, %v2368
    %v2380 = vadd.f32 %v2349, %v2368
    %v2381 = vadd.f32 %v2351, %v2368
    %v2382 = vadd.f32 %v2353, %v2368
    %v2383 = vadd.f32 %v2355, %v2368
    %v2384 = vadd.f32 %v2357, %v2368
    %v2385 = vadd.f32 %v2359, %v2368
    %v2402 = vlaneseq
    %v2403 = vand.u32 %v2402, 127
    %v2404 = vlaneseq
    %v2405 = vshrl.u32 %v2404, 7
    %v2406 = vsub.s32 %v2403, %v2405
    %v2407 = vrot.slane %v2370, %v2406
    %v2408 = vadd.s32 %v2403, 4294967288
    %v2409 = vlaneseq
    %v2410 = vshrl.u32 %v2409, 7
    %v2411 = vsub.s32 %v2408, %v2410
    %v2412 = vrot.slane %v2371, %v2411
    %vm2413 = vcmask 130112
    %v2414 = vsel %vm2413, %v2412, %v2407
    %v2415 = vadd.s32 %v2403, 4294967280
    %v2416 = vlaneseq
    %v2417 = vshrl.u32 %v2416, 7
    %v2418 = vsub.s32 %v2415, %v2417
    %v2419 = vrot.slane %v2372, %v2418
    %vm2420 = vcmask 195712
    %v2421 = vsel %vm2420, %v2419, %v2414
    %v2422 = vadd.s32 %v2403, 4294967272
    %v2423 = vlaneseq
    %v2424 = vshrl.u32 %v2423, 7
    %v2425 = vsub.s32 %v2422, %v2424
    %v2426 = vrot.slane %v2373, %v2425
    %vm2427 = vcmask 261312
    %v2428 = vsel %vm2427, %v2426, %v2421
    %v2429 = vadd.s32 %v2403, 4294967264
    %v2430 = vlaneseq
    %v2431 = vshrl.u32 %v2430, 7
    %v2432 = vsub.s32 %v2429, %v2431
    %v2433 = vrot.slane %v2374, %v2432
    %vm2434 = vcmask 326912
    %v2435 = vsel %vm2434, %v2433, %v2428
    %v2436 = vadd.s32 %v2403, 4294967256
    %v2437 = vlaneseq
    %v2438 = vshrl.u32 %v2437, 7
    %v2439 = vsub.s32 %v2436, %v2438
    %v2440 = vrot.slane %v2375, %v2439
    %vm2441 = vcmask 392512
    %v2442 = vsel %vm2441, %v2440, %v2435
    %v2443 = vadd.s32 %v2403, 4294967248
    %v2444 = vlaneseq
    %v2445 = vshrl.u32 %v2444, 7
    %v2446 = vsub.s32 %v2443, %v2445
    %v2447 = vrot.slane %v2376, %v2446
    %vm2448 = vcmask 458112
    %v2449 = vsel %vm2448, %v2447, %v2442
    %v2450 = vadd.s32 %v2403, 4294967240
    %v2451 = vlaneseq
    %v2452 = vshrl.u32 %v2451, 7
    %v2453 = vsub.s32 %v2450, %v2452
    %v2454 = vrot.slane %v2377, %v2453
    %vm2455 = vcmask 523712
    %v2456 = vsel %vm2455, %v2454, %v2449
    %v2457 = vlaneseq
    %v2458 = vshrl.u32 %v2457, 7
    %v2459 = vsub.s32 %v2403, %v2458
    %v2460 = vrot.slane %v2378, %v2459
    %v2461 = vlaneseq
    %v2462 = vshrl.u32 %v2461, 7
    %v2463 = vsub.s32 %v2408, %v2462
    %v2464 = vrot.slane %v2379, %v2463
    %v2465 = vsel %vm2413, %v2464, %v2460
    %v2466 = vlaneseq
    %v2467 = vshrl.u32 %v2466, 7
    %v2468 = vsub.s32 %v2415, %v2467
    %v2469 = vrot.slane %v2380, %v2468
    %v2470 = vsel %vm2420, %v2469, %v2465
    %v2471 = vlaneseq
    %v2472 = vshrl.u32 %v2471, 7
    %v2473 = vsub.s32 %v2422, %v2472
    %v2474 = vrot.slane %v2381, %v2473
    %v2475 = vsel %vm2427, %v2474, %v2470
    %v2476 = vlaneseq
    %v2477 = vshrl.u32 %v2476, 7
    %v2478 = vsub.s32 %v2429, %v2477
    %v2479 = vrot.slane %v2382, %v2478
    %v2480 = vsel %vm2434, %v2479, %v2475
    %v2481 = vlaneseq
    %v2482 = vshrl.u32 %v2481, 7
    %v2483 = vsub.s32 %v2436, %v2482
    %v2484 = vrot.slane %v2383, %v2483
    %v2485 = vsel %vm2441, %v2484, %v2480
    %v2486 = vlaneseq
    %v2487 = vshrl.u32 %v2486, 7
    %v2488 = vsub.s32 %v2443, %v2487
    %v2489 = vrot.slane %v2384, %v2488
    %v2490 = vsel %vm2448, %v2489, %v2485
    %v2491 = vlaneseq
    %v2492 = vshrl.u32 %v2491, 7
    %v2493 = vsub.s32 %v2450, %v2492
    %v2494 = vrot.slane %v2385, %v2493
    %v2495 = vsel %vm2455, %v2494, %v2490
    %vm2496 = vcmask 1041409
    %v2497 = vsel %vm2496, %v2495, %v2456
    %vm2499 = vcmask 517120
    %2500 = vst.msk [vmem:[#allocation3] sm:$0x3] %vm2499, %v2497
    // Predicated region
    $region46: #{cnnet_forward.1} parent=1 // pred_check
      _
    $region47: #{cnnet_forward.1} parent=1 // pred_check_branch
      %2502 = sbr.rel (0) target = $region49
    $region48: #{cnnet_forward.1} parent=1 // pred_region
      %s2504 = ssub.s32 32, 32
      %2505 = vsyncadd [#allocation4], %s2504
      %s2507 = sshll.u32 [#allocation3], 4
      %s2508 = int_to_ptr.vmem [resolvable:$true] %s2507
      %2510 = dma.vmem_to_hbm [thread:$0]  %s2508, 32, %s11, [#allocation4]
    $region49: #{cnnet_forward.1} parent=1 // pred_fallthru
      _
    // Predicated region
    $region50: #{cnnet_forward.1} parent=1 // pred_check
      _
    $region51: #{cnnet_forward.1} parent=1 // pred_check_branch
      %2512 = sbr.rel (0) target = $region53
    $region52: #{cnnet_forward.1} parent=1 // pred_region
      %2513 = dma.done [#allocation4], 32
    $region53: #{cnnet_forward.1} parent=1 // pred_fallthru
      _
    %2514 = vsyncpa [#allocation4], 1

</llo_original>
